<compile_context>
chip_gen: v5e
topology: v5e:2x2
jax: 0.10.0
libtpu: 0.0.40
codegen_flags: <defaults>
</compile_context>

<pallas_src>
import jax
import jax.numpy as jnp
import numpy as np
from jax.experimental import pallas as pl
from jax.experimental.pallas import tpu as pltpu


# --------------------------------------------------------------------------- #
# Fused kernel: conv1(7x7,s2,p3) + bn1 + relu + maxpool(3x3,s2,p1)
# One grid step = (one batch element, one block of `th` pooled output rows).
# --------------------------------------------------------------------------- #
def _fused_stem_kernel(strip_ref, w_ref, b_ref, o_ref, conv_ref):
    # strip_ref: (RB, Wo, 42) bf16, RB = 2*th + 4.  Channel layout:
    #            [0:21]  = even padded-input rows, kw-folded (kw*3 + c)
    #            [21:42] = odd  padded-input rows, kw-folded
    # w_ref:     (4, 42, 128) bf16  scale-folded weights; pair a covers kh=2a
    #            (even half) and kh=2a+1 (odd half; zero for a==3).
    # b_ref:     (1, 128) f32 folded BN bias.
    # o_ref:     (th, Wout, 64) f32 pooled output block.
    # conv_ref:  (2*th+1, Wo, 128) f32 scratch with conv+bn+relu rows.
    th, wout, cout = o_ref.shape
    rb, wo, kfold = strip_ref.shape
    cpad = conv_ref.shape[2]
    nrows = 2 * th + 1
    m = nrows * wo

    # ---- conv1 + bn1 + relu: 4 accumulating matmuls over kh-pairs ----------
    # LHS for pair a is the strip shifted down by `a` rows (contiguous slice,
    # free reshape) -> no im2col materialisation, no lane shuffles.
    acc = jnp.dot(strip_ref[0:nrows].reshape(m, kfold), w_ref[0],
                  preferred_element_type=jnp.float32)
    for a in range(1, 4):
        acc = acc + jnp.dot(strip_ref[a:a + nrows].reshape(m, kfold), w_ref[a],
                            preferred_element_type=jnp.float32)
    conv_ref[...] = jnp.maximum(acc + b_ref[...], 0.0).reshape(nrows, wo, cpad)

    # Local conv row 0 of the first row-block corresponds to the pool's top
    # padding row: exclude it (post-ReLU values are >= 0, so 0 is neutral).
    @pl.when(pl.program_id(1) == 0)
    def _():
        conv_ref[0] = jnp.zeros((wo, cpad), jnp.float32)

    # ---- maxpool 3x3 / stride 2 / pad 1 (row-by-row, no big live tiles) ----
    for p in range(th):
        vm = jnp.maximum(conv_ref[2 * p],
                         jnp.maximum(conv_ref[2 * p + 1], conv_ref[2 * p + 2]))
        vr = vm.reshape(wout, 2, cpad)           # free relabel: fold W pairs
        even = vr[:, 0, :]                       # conv col 2q
        odd = vr[:, 1, :]                        # conv col 2q+1
        prev = jnp.concatenate(                  # conv col 2q-1 (0 at left edge)
            [jnp.zeros((1, cpad), jnp.float32), odd[:wout - 1, :]], axis=0)
        o_ref[p] = jnp.maximum(jnp.maximum(even, odd),
                               prev)[:, :cout].astype(o_ref.dtype)


def _pick_row_tile(hout, cap=8):
    """Largest divisor of hout that is <= cap and leaves >= 2 grid steps."""
    th = 1
    for cand in range(1, min(cap, hout) + 1):
        if hout % cand == 0 and hout // cand >= 2:
            th = cand
    return th


# --------------------------------------------------------------------------- #
# Wrapper (public API is NCHW, PyTorch convention)
# --------------------------------------------------------------------------- #
def visible_module_forward(x_nchw, params):
    w_oihw = params["conv1_w"]                       # (64, Cin, 7, 7), no bias
    gamma, beta = params["bn1_gamma"], params["bn1_beta"]
    rmean, rvar = params["bn1_mean"], params["bn1_var"]
    eps = 1e-5

    n, cin, h, w = x_nchw.shape
    kh = kw = 7
    cout = w_oihw.shape[0]
    cpad = 128                                        # lane-dense MXU N dim
    assert w_oihw.shape[1] == cin
    assert h % 4 == 0 and w % 4 == 0, "wrapper assumes H, W divisible by 4"

    ho, wo = h // 2, w // 2                           # conv1 output spatial
    hout, wout = ho // 2, wo // 2                     # pooled output spatial
    kfold = 2 * kw * cin                              # 42

    th = _pick_row_tile(hout)
    n_rb = hout // th
    rb = 2 * th + 4                                   # strip rows per block

    # ---- input preprocessing (pure data movement, fused by XLA under jit) --
    x = jnp.transpose(x_nchw, (0, 2, 3, 1)).astype(jnp.bfloat16)       # NHWC
    # top pad 5 = 3 (conv) + 2 (so the pool's top halo conv row is addressable)
    xp = jnp.pad(x, ((0, 0), (5, 3), (3, 3), (0, 0)))                   # (N,H+8,W+6,Cin)
    # fold the 7 kw taps (stride-2 phases) into channels -> (N, H+8, Wo, 21)
    xkw = jnp.concatenate(
        [xp[:, :, j:j + 2 * wo:2, :] for j in range(kw)], axis=-1)
    # interleave row parity into channels -> (N, Ho+4, Wo, 42)
    xeo = jnp.concatenate([xkw[:, 0::2], xkw[:, 1::2]], axis=-1)
    # overlapping row strips, one per pooled-row block
    strips = jnp.stack(
        [xeo[:, 2 * th * r: 2 * th * r + rb] for r in range(n_rb)], axis=1)
    # strips: (N, n_rb, rb, Wo, 42) bf16

    # ---- fold BN scale into the weights, rearrange into kh-pairs -----------
    inv_std = gamma / jnp.sqrt(rvar + eps)
    wt = jnp.transpose(w_oihw, (2, 3, 1, 0)).astype(jnp.float32)         # (7,7,Cin,64)
    wt = wt * inv_std[None, None, None, :]
    wt = wt.reshape(kh, kw * cin, cout)                                  # (7,21,64)
    wt = jnp.pad(wt, ((0, 1), (0, 0), (0, cpad - cout)))                 # (8,21,128)
    w4 = wt.reshape(4, kfold, cpad).astype(jnp.bfloat16)                 # (4,42,128)
    bias = jnp.pad(beta - rmean * inv_std,
                   (0, cpad - cout)).reshape(1, cpad).astype(jnp.float32)

    cost = pl.CostEstimate(
        flops=2 * n * n_rb * (2 * th + 1) * wo * (4 * kfold) * cpad,
        transcendentals=0,
        bytes_accessed=strips.size * 2 + w4.size * 2 + bias.size * 4
                       + n * hout * wout * cout * 4)

    pooled = pl.pallas_call(
        _fused_stem_kernel,
        out_shape=jax.ShapeDtypeStruct((n, hout, wout, cout), jnp.float32),
        grid_spec=pltpu.PrefetchScalarGridSpec(
            num_scalar_prefetch=0,
            grid=(n, n_rb),
            in_specs=[
                pl.BlockSpec((None, None, rb, wo, kfold),
                             lambda b, r: (b, r, 0, 0, 0)),
                pl.BlockSpec((4, kfold, cpad), lambda b, r: (0, 0, 0)),
                pl.BlockSpec((1, cpad), lambda b, r: (0, 0)),
            ],
            out_specs=pl.BlockSpec((None, th, wout, cout),
                                   lambda b, r: (b, r, 0, 0)),
            scratch_shapes=[pltpu.VMEM((2 * th + 1, wo, cpad), jnp.float32)],
        ),
        compiler_params=pltpu.CompilerParams(
            dimension_semantics=("parallel", "parallel")),
        cost_estimate=cost,
    )(strips, w4, bias)

    return jnp.transpose(pooled, (0, 3, 1, 2))       # NCHW


# --------------------------------------------------------------------------- #
# Pure-JAX reference (for validation)
# --------------------------------------------------------------------------- #
def reference_forward(x_nchw, params):
    eps = 1e-5
    y = jax.lax.conv_general_dilated(
        x_nchw, params["conv1_w"], window_strides=(2, 2),
        padding=((3, 3), (3, 3)), dimension_numbers=("NCHW", "OIHW", "NCHW"))
    scale = params["bn1_gamma"] / jnp.sqrt(params["bn1_var"] + eps)
    bias = params["bn1_beta"] - params["bn1_mean"] * scale
    y = y * scale[None, :, None, None] + bias[None, :, None, None]
    y = jnp.maximum(y, 0.0)
    y = jax.lax.reduce_window(
        y, -jnp.inf, jax.lax.max,
        window_dimensions=(1, 1, 3, 3), window_strides=(1, 1, 2, 2),
        padding=((0, 0), (0, 0), (1, 1), (1, 1)))
    return y


if __name__ == "__main__":
    key = jax.random.PRNGKey(0)
    k_x, k_w, k_g, k_b, k_m, k_v = jax.random.split(key, 6)

    # deterministic synthetic parameters (ResNet-50 stem shapes)
    params = {
        "conv1_w": jax.random.normal(k_w, (64, 3, 7, 7), jnp.float32) * 0.05,
        "bn1_gamma": jax.random.uniform(k_g, (64,), jnp.float32, 0.5, 1.5),
        "bn1_beta": jax.random.normal(k_b, (64,), jnp.float32) * 0.1,
        "bn1_mean": jax.random.normal(k_m, (64,), jnp.float32) * 0.1,
        "bn1_var": jax.random.uniform(k_v, (64,), jnp.float32, 0.5, 1.5),
    }

    # small RGB image batch (NCHW, PyTorch convention)
    x = jax.random.normal(k_x, (2, 3, 32, 32), jnp.float32)

    fwd = jax.jit(visible_module_forward)
    out = jax.block_until_ready(fwd(x, params))
    assert out.shape == (2, 64, 8, 8), out.shape

    ref = jax.block_until_ready(reference_forward(x, params))
    err = float(jnp.max(jnp.abs(out - ref)))
    assert np.allclose(np.asarray(out), np.asarray(ref), rtol=2e-2, atol=2e-2), (
        "max abs err = %g" % err)

    print("KERNEL_OK")
</pallas_src>

<mosaic_0001>
module attributes {stable_mosaic.version = 11 : i64} {
  func.func @_fused_stem_kernel(%arg0: i32, %arg1: i32, %arg2: memref<1x1x12x16x42xbf16, #tpu.memory_space<vmem>>, %arg3: memref<4x42x128xbf16, #tpu.memory_space<vmem>>, %arg4: memref<1x128xf32, #tpu.memory_space<vmem>>, %arg5: memref<1x4x8x64xf32, #tpu.memory_space<vmem>>, %arg6: memref<9x16x128xf32, #tpu.memory_space<vmem>>) attributes {dimension_semantics = [#tpu.dimension_semantics<parallel>, #tpu.dimension_semantics<parallel>], iteration_bounds = array<i64: 2, 2>, scalar_prefetch = 0 : i64, scratch_operands = 1 : i64, tpu.core_type = #tpu.core_type<tc>, window_params = [{transform_indices = @transform_0, window_bounds = array<i64: 1, 1, 12, 16, 42>}, {pipeline_mode = #tpu.pipeline_mode<synchronous>, transform_indices = @transform_1, window_bounds = array<i64: 4, 42, 128>}, {pipeline_mode = #tpu.pipeline_mode<synchronous>, transform_indices = @transform_2, window_bounds = array<i64: 1, 128>}, {transform_indices = @transform_3, window_bounds = array<i64: 1, 4, 8, 64>}]} {
    %c0 = arith.constant 0 : index
    %c0_0 = arith.constant 0 : index
    %c0_1 = arith.constant 0 : index
    %c0_2 = arith.constant 0 : index
    %c0_3 = arith.constant 0 : index
    %0 = vector.load %arg2[%c0, %c0_0, %c0_1, %c0_2, %c0_3] : memref<1x1x12x16x42xbf16, #tpu.memory_space<vmem>>, vector<1x1x9x16x42xbf16>
    %1 = vector.shape_cast %0 : vector<1x1x9x16x42xbf16> to vector<9x16x42xbf16>
    %2 = vector.shape_cast %1 : vector<9x16x42xbf16> to vector<144x42xbf16>
    %c0_4 = arith.constant 0 : index
    %c0_5 = arith.constant 0 : index
    %c0_6 = arith.constant 0 : index
    %3 = vector.load %arg3[%c0_4, %c0_5, %c0_6] : memref<4x42x128xbf16, #tpu.memory_space<vmem>>, vector<1x42x128xbf16>
    %4 = vector.shape_cast %3 : vector<1x42x128xbf16> to vector<42x128xbf16>
    %cst = arith.constant dense<0.000000e+00> : vector<144x128xf32>
    %5 = tpu.matmul %2, %4, %cst {dimension_numbers = #tpu.dot_dimension_numbers<[1], [0], [0], [1], [0, 0, 1, 1], [], []>} : vector<144x42xbf16>, vector<42x128xbf16>, vector<144x128xf32> -> vector<144x128xf32>
    %c0_7 = arith.constant 0 : index
    %c0_8 = arith.constant 0 : index
    %c1 = arith.constant 1 : index
    %c0_9 = arith.constant 0 : index
    %c0_10 = arith.constant 0 : index
    %6 = vector.load %arg2[%c0_7, %c0_8, %c1, %c0_9, %c0_10] : memref<1x1x12x16x42xbf16, #tpu.memory_space<vmem>>, vector<1x1x9x16x42xbf16>
    %7 = vector.shape_cast %6 : vector<1x1x9x16x42xbf16> to vector<9x16x42xbf16>
    %8 = vector.shape_cast %7 : vector<9x16x42xbf16> to vector<144x42xbf16>
    %c1_11 = arith.constant 1 : index
    %c0_12 = arith.constant 0 : index
    %c0_13 = arith.constant 0 : index
    %9 = vector.load %arg3[%c1_11, %c0_12, %c0_13] : memref<4x42x128xbf16, #tpu.memory_space<vmem>>, vector<1x42x128xbf16>
    %10 = vector.shape_cast %9 : vector<1x42x128xbf16> to vector<42x128xbf16>
    %cst_14 = arith.constant dense<0.000000e+00> : vector<144x128xf32>
    %11 = tpu.matmul %8, %10, %cst_14 {dimension_numbers = #tpu.dot_dimension_numbers<[1], [0], [0], [1], [0, 0, 1, 1], [], []>} : vector<144x42xbf16>, vector<42x128xbf16>, vector<144x128xf32> -> vector<144x128xf32>
    %12 = arith.addf %5, %11 : vector<144x128xf32>
    %c0_15 = arith.constant 0 : index
    %c0_16 = arith.constant 0 : index
    %c2 = arith.constant 2 : index
    %c0_17 = arith.constant 0 : index
    %c0_18 = arith.constant 0 : index
    %13 = vector.load %arg2[%c0_15, %c0_16, %c2, %c0_17, %c0_18] : memref<1x1x12x16x42xbf16, #tpu.memory_space<vmem>>, vector<1x1x9x16x42xbf16>
    %14 = vector.shape_cast %13 : vector<1x1x9x16x42xbf16> to vector<9x16x42xbf16>
    %15 = vector.shape_cast %14 : vector<9x16x42xbf16> to vector<144x42xbf16>
    %c2_19 = arith.constant 2 : index
    %c0_20 = arith.constant 0 : index
    %c0_21 = arith.constant 0 : index
    %16 = vector.load %arg3[%c2_19, %c0_20, %c0_21] : memref<4x42x128xbf16, #tpu.memory_space<vmem>>, vector<1x42x128xbf16>
    %17 = vector.shape_cast %16 : vector<1x42x128xbf16> to vector<42x128xbf16>
    %cst_22 = arith.constant dense<0.000000e+00> : vector<144x128xf32>
    %18 = tpu.matmul %15, %17, %cst_22 {dimension_numbers = #tpu.dot_dimension_numbers<[1], [0], [0], [1], [0, 0, 1, 1], [], []>} : vector<144x42xbf16>, vector<42x128xbf16>, vector<144x128xf32> -> vector<144x128xf32>
    %19 = arith.addf %12, %18 : vector<144x128xf32>
    %c0_23 = arith.constant 0 : index
    %c0_24 = arith.constant 0 : index
    %c3 = arith.constant 3 : index
    %c0_25 = arith.constant 0 : index
    %c0_26 = arith.constant 0 : index
    %20 = vector.load %arg2[%c0_23, %c0_24, %c3, %c0_25, %c0_26] : memref<1x1x12x16x42xbf16, #tpu.memory_space<vmem>>, vector<1x1x9x16x42xbf16>
    %21 = vector.shape_cast %20 : vector<1x1x9x16x42xbf16> to vector<9x16x42xbf16>
    %22 = vector.shape_cast %21 : vector<9x16x42xbf16> to vector<144x42xbf16>
    %c3_27 = arith.constant 3 : index
    %c0_28 = arith.constant 0 : index
    %c0_29 = arith.constant 0 : index
    %23 = vector.load %arg3[%c3_27, %c0_28, %c0_29] : memref<4x42x128xbf16, #tpu.memory_space<vmem>>, vector<1x42x128xbf16>
    %24 = vector.shape_cast %23 : vector<1x42x128xbf16> to vector<42x128xbf16>
    %cst_30 = arith.constant dense<0.000000e+00> : vector<144x128xf32>
    %25 = tpu.matmul %22, %24, %cst_30 {dimension_numbers = #tpu.dot_dimension_numbers<[1], [0], [0], [1], [0, 0, 1, 1], [], []>} : vector<144x42xbf16>, vector<42x128xbf16>, vector<144x128xf32> -> vector<144x128xf32>
    %26 = arith.addf %19, %25 : vector<144x128xf32>
    %c0_31 = arith.constant 0 : index
    %c0_32 = arith.constant 0 : index
    %27 = vector.load %arg4[%c0_31, %c0_32] : memref<1x128xf32, #tpu.memory_space<vmem>>, vector<1x128xf32>
    %28 = vector.broadcast %27 : vector<1x128xf32> to vector<144x128xf32>
    %29 = arith.addf %26, %28 : vector<144x128xf32>
    %cst_33 = arith.constant 0.000000e+00 : f32
    %30 = vector.broadcast %cst_33 : f32 to vector<144x128xf32>
    %31 = arith.maximumf %29, %30 : vector<144x128xf32>
    %32 = vector.shape_cast %31 : vector<144x128xf32> to vector<9x16x128xf32>
    %c0_34 = arith.constant 0 : index
    %c0_35 = arith.constant 0 : index
    %c0_36 = arith.constant 0 : index
    %33 = vector.load %arg6[%c0_34, %c0_35, %c0_36] : memref<9x16x128xf32, #tpu.memory_space<vmem>>, vector<9x16x128xf32>
    tpu.vector_store %arg6[%c0_34, %c0_35, %c0_36], %32 {strides = array<i32>} : memref<9x16x128xf32, #tpu.memory_space<vmem>>, vector<9x16x128xf32>,
    %c0_i32 = arith.constant 0 : i32
    %34 = arith.cmpi eq, %arg1, %c0_i32 : i32
    %35 = arith.extui %34 : i1 to i32
    %c0_i32_37 = arith.constant 0 : i32
    %36 = arith.cmpi ne, %35, %c0_i32_37 : i32
    scf.if %36 {
      %cst_89 = arith.constant 0.000000e+00 : f32
      %125 = vector.broadcast %cst_89 : f32 to vector<16x128xf32>
      %c0_90 = arith.constant 0 : index
      %c0_91 = arith.constant 0 : index
      %c0_92 = arith.constant 0 : index
      %126 = vector.load %arg6[%c0_90, %c0_91, %c0_92] : memref<9x16x128xf32, #tpu.memory_space<vmem>>, vector<1x16x128xf32>
      %127 = vector.shape_cast %126 : vector<1x16x128xf32> to vector<16x128xf32>
      %128 = vector.shape_cast %125 : vector<16x128xf32> to vector<1x16x128xf32>
      tpu.vector_store %arg6[%c0_90, %c0_91, %c0_92], %128 {strides = array<i32>} : memref<9x16x128xf32, #tpu.memory_space<vmem>>, vector<1x16x128xf32>,
    } else {
    }
    %c0_38 = arith.constant 0 : index
    %c0_39 = arith.constant 0 : index
    %c0_40 = arith.constant 0 : index
    %37 = vector.load %arg6[%c0_38, %c0_39, %c0_40] : memref<9x16x128xf32, #tpu.memory_space<vmem>>, vector<1x16x128xf32>
    %38 = vector.shape_cast %37 : vector<1x16x128xf32> to vector<16x128xf32>
    %c1_41 = arith.constant 1 : index
    %c0_42 = arith.constant 0 : index
    %c0_43 = arith.constant 0 : index
    %39 = vector.load %arg6[%c1_41, %c0_42, %c0_43] : memref<9x16x128xf32, #tpu.memory_space<vmem>>, vector<1x16x128xf32>
    %40 = vector.shape_cast %39 : vector<1x16x128xf32> to vector<16x128xf32>
    %c2_44 = arith.constant 2 : index
    %c0_45 = arith.constant 0 : index
    %c0_46 = arith.constant 0 : index
    %41 = vector.load %arg6[%c2_44, %c0_45, %c0_46] : memref<9x16x128xf32, #tpu.memory_space<vmem>>, vector<1x16x128xf32>
    %42 = vector.shape_cast %41 : vector<1x16x128xf32> to vector<16x128xf32>
    %43 = arith.maximumf %40, %42 : vector<16x128xf32>
    %44 = arith.maximumf %38, %43 : vector<16x128xf32>
    %45 = vector.shape_cast %44 : vector<16x128xf32> to vector<8x2x128xf32>
    %46 = vector.extract_strided_slice %45 {offsets = [0, 0, 0], sizes = [8, 1, 128], strides = [1, 1, 1]} : vector<8x2x128xf32> to vector<8x1x128xf32>
    %47 = vector.shape_cast %46 : vector<8x1x128xf32> to vector<8x128xf32>
    %48 = vector.extract_strided_slice %45 {offsets = [0, 1, 0], sizes = [8, 1, 128], strides = [1, 1, 1]} : vector<8x2x128xf32> to vector<8x1x128xf32>
    %49 = vector.shape_cast %48 : vector<8x1x128xf32> to vector<8x128xf32>
    %cst_47 = arith.constant 0.000000e+00 : f32
    %50 = vector.broadcast %cst_47 : f32 to vector<1x128xf32>
    %51 = vector.extract_strided_slice %49 {offsets = [0, 0], sizes = [7, 128], strides = [1, 1]} : vector<8x128xf32> to vector<7x128xf32>
    %52 = tpu.concatenate %50, %51 in 0 : vector<1x128xf32>, vector<7x128xf32> -> vector<8x128xf32>
    %53 = arith.maximumf %47, %49 : vector<8x128xf32>
    %54 = arith.maximumf %53, %52 : vector<8x128xf32>
    %55 = vector.extract_strided_slice %54 {offsets = [0, 0], sizes = [8, 64], strides = [1, 1]} : vector<8x128xf32> to vector<8x64xf32>
    %c0_48 = arith.constant 0 : index
    %c0_49 = arith.constant 0 : index
    %c0_50 = arith.constant 0 : index
    %c0_51 = arith.constant 0 : index
    %56 = vector.load %arg5[%c0_48, %c0_49, %c0_50, %c0_51] : memref<1x4x8x64xf32, #tpu.memory_space<vmem>>, vector<1x1x8x64xf32>
    %57 = vector.shape_cast %56 : vector<1x1x8x64xf32> to vector<8x64xf32>
    %58 = vector.shape_cast %55 : vector<8x64xf32> to vector<1x1x8x64xf32>
    tpu.vector_store %arg5[%c0_48, %c0_49, %c0_50, %c0_51], %58 {strides = array<i32>} : memref<1x4x8x64xf32, #tpu.memory_space<vmem>>, vector<1x1x8x64xf32>,
    %c2_52 = arith.constant 2 : index
    %c0_53 = arith.constant 0 : index
    %c0_54 = arith.constant 0 : index
    %59 = vector.load %arg6[%c2_52, %c0_53, %c0_54] : memref<9x16x128xf32, #tpu.memory_space<vmem>>, vector<1x16x128xf32>
    %60 = vector.shape_cast %59 : vector<1x16x128xf32> to vector<16x128xf32>
    %c3_55 = arith.constant 3 : index
    %c0_56 = arith.constant 0 : index
    %c0_57 = arith.constant 0 : index
    %61 = vector.load %arg6[%c3_55, %c0_56, %c0_57] : memref<9x16x128xf32, #tpu.memory_space<vmem>>, vector<1x16x128xf32>
    %62 = vector.shape_cast %61 : vector<1x16x128xf32> to vector<16x128xf32>
    %c4 = arith.constant 4 : index
    %c0_58 = arith.constant 0 : index
    %c0_59 = arith.constant 0 : index
    %63 = vector.load %arg6[%c4, %c0_58, %c0_59] : memref<9x16x128xf32, #tpu.memory_space<vmem>>, vector<1x16x128xf32>
    %64 = vector.shape_cast %63 : vector<1x16x128xf32> to vector<16x128xf32>
    %65 = arith.maximumf %62, %64 : vector<16x128xf32>
    %66 = arith.maximumf %60, %65 : vector<16x128xf32>
    %67 = vector.shape_cast %66 : vector<16x128xf32> to vector<8x2x128xf32>
    %68 = vector.extract_strided_slice %67 {offsets = [0, 0, 0], sizes = [8, 1, 128], strides = [1, 1, 1]} : vector<8x2x128xf32> to vector<8x1x128xf32>
    %69 = vector.shape_cast %68 : vector<8x1x128xf32> to vector<8x128xf32>
    %70 = vector.extract_strided_slice %67 {offsets = [0, 1, 0], sizes = [8, 1, 128], strides = [1, 1, 1]} : vector<8x2x128xf32> to vector<8x1x128xf32>
    %71 = vector.shape_cast %70 : vector<8x1x128xf32> to vector<8x128xf32>
    %cst_60 = arith.constant 0.000000e+00 : f32
    %72 = vector.broadcast %cst_60 : f32 to vector<1x128xf32>
    %73 = vector.extract_strided_slice %71 {offsets = [0, 0], sizes = [7, 128], strides = [1, 1]} : vector<8x128xf32> to vector<7x128xf32>
    %74 = tpu.concatenate %72, %73 in 0 : vector<1x128xf32>, vector<7x128xf32> -> vector<8x128xf32>
    %75 = arith.maximumf %69, %71 : vector<8x128xf32>
    %76 = arith.maximumf %75, %74 : vector<8x128xf32>
    %77 = vector.extract_strided_slice %76 {offsets = [0, 0], sizes = [8, 64], strides = [1, 1]} : vector<8x128xf32> to vector<8x64xf32>
    %c0_61 = arith.constant 0 : index
    %c1_62 = arith.constant 1 : index
    %c0_63 = arith.constant 0 : index
    %c0_64 = arith.constant 0 : index
    %78 = vector.load %arg5[%c0_61, %c1_62, %c0_63, %c0_64] : memref<1x4x8x64xf32, #tpu.memory_space<vmem>>, vector<1x1x8x64xf32>
    %79 = vector.shape_cast %78 : vector<1x1x8x64xf32> to vector<8x64xf32>
    %80 = vector.shape_cast %77 : vector<8x64xf32> to vector<1x1x8x64xf32>
    tpu.vector_store %arg5[%c0_61, %c1_62, %c0_63, %c0_64], %80 {strides = array<i32>} : memref<1x4x8x64xf32, #tpu.memory_space<vmem>>, vector<1x1x8x64xf32>,
    %c4_65 = arith.constant 4 : index
    %c0_66 = arith.constant 0 : index
    %c0_67 = arith.constant 0 : index
    %81 = vector.load %arg6[%c4_65, %c0_66, %c0_67] : memref<9x16x128xf32, #tpu.memory_space<vmem>>, vector<1x16x128xf32>
    %82 = vector.shape_cast %81 : vector<1x16x128xf32> to vector<16x128xf32>
    %c5 = arith.constant 5 : index
    %c0_68 = arith.constant 0 : index
    %c0_69 = arith.constant 0 : index
    %83 = vector.load %arg6[%c5, %c0_68, %c0_69] : memref<9x16x128xf32, #tpu.memory_space<vmem>>, vector<1x16x128xf32>
    %84 = vector.shape_cast %83 : vector<1x16x128xf32> to vector<16x128xf32>
    %c6 = arith.constant 6 : index
    %c0_70 = arith.constant 0 : index
    %c0_71 = arith.constant 0 : index
    %85 = vector.load %arg6[%c6, %c0_70, %c0_71] : memref<9x16x128xf32, #tpu.memory_space<vmem>>, vector<1x16x128xf32>
    %86 = vector.shape_cast %85 : vector<1x16x128xf32> to vector<16x128xf32>
    %87 = arith.maximumf %84, %86 : vector<16x128xf32>
    %88 = arith.maximumf %82, %87 : vector<16x128xf32>
    %89 = vector.shape_cast %88 : vector<16x128xf32> to vector<8x2x128xf32>
    %90 = vector.extract_strided_slice %89 {offsets = [0, 0, 0], sizes = [8, 1, 128], strides = [1, 1, 1]} : vector<8x2x128xf32> to vector<8x1x128xf32>
    %91 = vector.shape_cast %90 : vector<8x1x128xf32> to vector<8x128xf32>
    %92 = vector.extract_strided_slice %89 {offsets = [0, 1, 0], sizes = [8, 1, 128], strides = [1, 1, 1]} : vector<8x2x128xf32> to vector<8x1x128xf32>
    %93 = vector.shape_cast %92 : vector<8x1x128xf32> to vector<8x128xf32>
    %cst_72 = arith.constant 0.000000e+00 : f32
    %94 = vector.broadcast %cst_72 : f32 to vector<1x128xf32>
    %95 = vector.extract_strided_slice %93 {offsets = [0, 0], sizes = [7, 128], strides = [1, 1]} : vector<8x128xf32> to vector<7x128xf32>
    %96 = tpu.concatenate %94, %95 in 0 : vector<1x128xf32>, vector<7x128xf32> -> vector<8x128xf32>
    %97 = arith.maximumf %91, %93 : vector<8x128xf32>
    %98 = arith.maximumf %97, %96 : vector<8x128xf32>
    %99 = vector.extract_strided_slice %98 {offsets = [0, 0], sizes = [8, 64], strides = [1, 1]} : vector<8x128xf32> to vector<8x64xf32>
    %c0_73 = arith.constant 0 : index
    %c2_74 = arith.constant 2 : index
    %c0_75 = arith.constant 0 : index
    %c0_76 = arith.constant 0 : index
    %100 = vector.load %arg5[%c0_73, %c2_74, %c0_75, %c0_76] : memref<1x4x8x64xf32, #tpu.memory_space<vmem>>, vector<1x1x8x64xf32>
    %101 = vector.shape_cast %100 : vector<1x1x8x64xf32> to vector<8x64xf32>
    %102 = vector.shape_cast %99 : vector<8x64xf32> to vector<1x1x8x64xf32>
    tpu.vector_store %arg5[%c0_73, %c2_74, %c0_75, %c0_76], %102 {strides = array<i32>} : memref<1x4x8x64xf32, #tpu.memory_space<vmem>>, vector<1x1x8x64xf32>,
    %c6_77 = arith.constant 6 : index
    %c0_78 = arith.constant 0 : index
    %c0_79 = arith.constant 0 : index
    %103 = vector.load %arg6[%c6_77, %c0_78, %c0_79] : memref<9x16x128xf32, #tpu.memory_space<vmem>>, vector<1x16x128xf32>
    %104 = vector.shape_cast %103 : vector<1x16x128xf32> to vector<16x128xf32>
    %c7 = arith.constant 7 : index
    %c0_80 = arith.constant 0 : index
    %c0_81 = arith.constant 0 : index
    %105 = vector.load %arg6[%c7, %c0_80, %c0_81] : memref<9x16x128xf32, #tpu.memory_space<vmem>>, vector<1x16x128xf32>
    %106 = vector.shape_cast %105 : vector<1x16x128xf32> to vector<16x128xf32>
    %c8 = arith.constant 8 : index
    %c0_82 = arith.constant 0 : index
    %c0_83 = arith.constant 0 : index
    %107 = vector.load %arg6[%c8, %c0_82, %c0_83] : memref<9x16x128xf32, #tpu.memory_space<vmem>>, vector<1x16x128xf32>
    %108 = vector.shape_cast %107 : vector<1x16x128xf32> to vector<16x128xf32>
    %109 = arith.maximumf %106, %108 : vector<16x128xf32>
    %110 = arith.maximumf %104, %109 : vector<16x128xf32>
    %111 = vector.shape_cast %110 : vector<16x128xf32> to vector<8x2x128xf32>
    %112 = vector.extract_strided_slice %111 {offsets = [0, 0, 0], sizes = [8, 1, 128], strides = [1, 1, 1]} : vector<8x2x128xf32> to vector<8x1x128xf32>
    %113 = vector.shape_cast %112 : vector<8x1x128xf32> to vector<8x128xf32>
    %114 = vector.extract_strided_slice %111 {offsets = [0, 1, 0], sizes = [8, 1, 128], strides = [1, 1, 1]} : vector<8x2x128xf32> to vector<8x1x128xf32>
    %115 = vector.shape_cast %114 : vector<8x1x128xf32> to vector<8x128xf32>
    %cst_84 = arith.constant 0.000000e+00 : f32
    %116 = vector.broadcast %cst_84 : f32 to vector<1x128xf32>
    %117 = vector.extract_strided_slice %115 {offsets = [0, 0], sizes = [7, 128], strides = [1, 1]} : vector<8x128xf32> to vector<7x128xf32>
    %118 = tpu.concatenate %116, %117 in 0 : vector<1x128xf32>, vector<7x128xf32> -> vector<8x128xf32>
    %119 = arith.maximumf %113, %115 : vector<8x128xf32>
    %120 = arith.maximumf %119, %118 : vector<8x128xf32>
    %121 = vector.extract_strided_slice %120 {offsets = [0, 0], sizes = [8, 64], strides = [1, 1]} : vector<8x128xf32> to vector<8x64xf32>
    %c0_85 = arith.constant 0 : index
    %c3_86 = arith.constant 3 : index
    %c0_87 = arith.constant 0 : index
    %c0_88 = arith.constant 0 : index
    %122 = vector.load %arg5[%c0_85, %c3_86, %c0_87, %c0_88] : memref<1x4x8x64xf32, #tpu.memory_space<vmem>>, vector<1x1x8x64xf32>
    %123 = vector.shape_cast %122 : vector<1x1x8x64xf32> to vector<8x64xf32>
    %124 = vector.shape_cast %121 : vector<8x64xf32> to vector<1x1x8x64xf32>
    tpu.vector_store %arg5[%c0_85, %c3_86, %c0_87, %c0_88], %124 {strides = array<i32>} : memref<1x4x8x64xf32, #tpu.memory_space<vmem>>, vector<1x1x8x64xf32>,
    return
  }
  func.func @transform_0(%arg0: i32, %arg1: i32) -> (i32, i32, i32, i32, i32) {
    %c0_i32 = arith.constant 0 : i32
    %c0_i32_0 = arith.constant 0 : i32
    %c0_i32_1 = arith.constant 0 : i32
    %c0_i32_2 = arith.constant 0 : i32
    return %arg0, %arg1, %c0_i32, %c0_i32_0, %c0_i32_1 : i32, i32, i32, i32, i32
  }
  func.func @transform_1(%arg0: i32, %arg1: i32) -> (i32, i32, i32) {
    %c0_i32 = arith.constant 0 : i32
    %c0_i32_0 = arith.constant 0 : i32
    %c0_i32_1 = arith.constant 0 : i32
    %c0_i32_2 = arith.constant 0 : i32
    return %c0_i32, %c0_i32_0, %c0_i32_1 : i32, i32, i32
  }
  func.func @transform_2(%arg0: i32, %arg1: i32) -> (i32, i32) {
    %c0_i32 = arith.constant 0 : i32
    %c0_i32_0 = arith.constant 0 : i32
    %c0_i32_1 = arith.constant 0 : i32
    return %c0_i32, %c0_i32_0 : i32, i32
  }
  func.func @transform_3(%arg0: i32, %arg1: i32) -> (i32, i32, i32, i32) {
    %c0_i32 = arith.constant 0 : i32
    %c0_i32_0 = arith.constant 0 : i32
    %c0_i32_1 = arith.constant 0 : i32
    return %arg0, %arg1, %c0_i32, %c0_i32_0 : i32, i32, i32, i32
  }
}

</mosaic_0001>

<llo_original>
// kernel: visible_module_forward.1
$region0: #{visible_module_forward.1}
  #allocation0 [shape = 'u32[]', space=smem, size = 0x4, offset = 0x4, fixed_abs, tag = 'smem constant byte address 0x4 - core index']
  #allocation1 [shape = 'u32[72,128]{1,0:T(1,128)}', space=vmem, size = 0x9000, scoped, tag = 'internal scratch']
  #allocation2 [shape = 'f32[9,16,128]{2,1,0:T(8,128)}', space=vmem, size = 0x12000, scoped, tag = 'scratch operand']
  %s0 = inlined_call_operand.vmem [shape: bf16[2,2,12,16,42], index: 0, kind: input, shape index: {}]
  %s1 = inlined_call_operand.vmem [shape: bf16[4,42,128], index: 1, kind: input, shape index: {}]
  %s2 = inlined_call_operand.vmem [shape: f32[1,128], index: 2, kind: input, shape index: {}]
  %s3 = inlined_call_operand.hbm [shape: f32[2,8,8,64], index: 3, kind: output, shape index: {}]
  %s4 = sld [smem:[#allocation0]]
  $region49: #{visible_module_forward.1} parent=0
    _
  %s6 = ssub.s32 1, %s4
  %s7 = scalar_select 0, %s6, %s4
  $region1: #{visible_module_forward.1} parent=0
    #allocation3 [shape = 'u8[32768]{0}', space=vmem, size = 0x8000, scoped, tag = 'output window, operand 0']
    #allocation4 [shape = 's32[2]{0}', space=sflag, size = 0x8, scoped, tag = 'scoped memory for visible_module_forward.1']
    %8 = vsyncpa [#allocation4], 0
    %s9 = scalar_lea.sflag [#allocation4], 1
    %10 = vsyncpa %s9, 0
    loop: start=0, step=1, limit=6
    $region2: #{visible_module_forward.1} parent=1 // loop_pre_header
      _
    $region3: #{visible_module_forward.1} parent=1 // loop_header
      %s12 = sphi 0, %s16
      %p13 = scmp.ge.s32.totalorder %s12, 6
      %s19 = sphi 0, %s31
      %s20 = sphi 0, %s27
      %s21 = sphi 0, %s19
      %s22 = sphi 0, %s20
      %s23 = sphi 0, %s21
      %s24 = sphi 0, %s22
      %s36 = sphi 0, %s38
      %s39 = sphi 0, %s36
      %s40 = sphi 0, %s39
      %s56 = sphi 0, %s40
      %s60 = sphi 0, %s60
      %s62 = sphi 0, %s60
      %s63 = sphi 0, %s62
      %s77 = sphi 0, %s63
      %s81 = sphi 0, %s81
      %s83 = sphi 0, %s81
      %s84 = sphi 0, %s83
      %s98 = sphi 0, %s84
      %s106 = sphi 0, %s108
      %s109 = sphi 0, %s106
      %s110 = sphi 0, %s109
      %s126 = sphi 0, %s110
    $region4: #{visible_module_forward.1} parent=1 // loop_header_branch
      %15 = sbr.rel (%p13) target = $region8
    $region5: #{visible_module_forward.1} parent=1 // loop_body
      %s17 = ssub.s32 %s12, 1
      %s18 = ssub.s32 %s12, 2
      %s25 = sadd.s32 1, %s20
      %p26 = scmp.ge.s32.totalorder %s25, 2
      %s27 = scalar_select %p26, 0, %s25
      %s28 = sadd.s32 1, %s19
      %s29 = scalar_select %p26, %s28, %s19
      %p30 = scmp.ge.s32.totalorder %s29, 2
      %s31 = scalar_select %p30, 0, %s29
      %s32 = ssub.s32 %s19, %s31
      %s33 = ssub.s32 %s20, %s27
      %s34 = sor.u32 %s32, %s33
      %p35 = scmp.eq.s32.totalorder %s34, 0
      %s37 = sadd.s32 %s36, 1
      %s38 = scalar_select %p35, %s36, %s37
      %p41 = pneg %p35
      %p42 = scmp.eq.s32.totalorder %s12, 3
      %p43 = por %p41, %p42
      %p44 = scmp.ne.s32.totalorder %s36, %s39
      %p45 = scmp.eq.s32.totalorder %s12, 0
      %p46 = por %p44, %p45
      %p47 = scmp.ne.s32.totalorder %s36, %s39
      %p48 = scmp.eq.s32.totalorder %s17, 3
      %p49 = por %p47, %p48
      %p50 = scmp.ne.s32.totalorder %s39, %s40
      %p51 = scmp.eq.s32.totalorder %s17, 0
      %p52 = por %p50, %p51
      %p53 = scmp.ne.s32.totalorder %s39, %s40
      %p54 = scmp.eq.s32.totalorder %s18, 3
      %p55 = por %p53, %p54
      %p57 = scmp.ne.s32.totalorder %s40, %s56
      %p58 = scmp.eq.s32.totalorder %s18, 0
      %p59 = por %p57, %p58
      %s61 = sadd.s32 %s60, 1
      %p64 = scmp.eq.s32.totalorder %s12, 3
      %p65 = scmp.ne.s32.totalorder %s60, %s62
      %p66 = scmp.eq.s32.totalorder %s12, 0
      %p67 = por %p65, %p66
      %p68 = scmp.ne.s32.totalorder %s60, %s62
      %p69 = scmp.eq.s32.totalorder %s17, 3
      %p70 = por %p68, %p69
      %p71 = scmp.ne.s32.totalorder %s62, %s63
      %p72 = scmp.eq.s32.totalorder %s17, 0
      %p73 = por %p71, %p72
      %p74 = scmp.ne.s32.totalorder %s62, %s63
      %p75 = scmp.eq.s32.totalorder %s18, 3
      %p76 = por %p74, %p75
      %p78 = scmp.ne.s32.totalorder %s63, %s77
      %p79 = scmp.eq.s32.totalorder %s18, 0
      %p80 = por %p78, %p79
      %s82 = sadd.s32 %s81, 1
      %p85 = scmp.eq.s32.totalorder %s12, 3
      %p86 = scmp.ne.s32.totalorder %s81, %s83
      %p87 = scmp.eq.s32.totalorder %s12, 0
      %p88 = por %p86, %p87
      %p89 = scmp.ne.s32.totalorder %s81, %s83
      %p90 = scmp.eq.s32.totalorder %s17, 3
      %p91 = por %p89, %p90
      %p92 = scmp.ne.s32.totalorder %s83, %s84
      %p93 = scmp.eq.s32.totalorder %s17, 0
      %p94 = por %p92, %p93
      %p95 = scmp.ne.s32.totalorder %s83, %s84
      %p96 = scmp.eq.s32.totalorder %s18, 3
      %p97 = por %p95, %p96
      %p99 = scmp.ne.s32.totalorder %s84, %s98
      %p100 = scmp.eq.s32.totalorder %s18, 0
      %p101 = por %p99, %p100
      %s102 = ssub.s32 %s19, %s31
      %s103 = ssub.s32 %s20, %s27
      %s104 = sor.u32 %s102, %s103
      %p105 = scmp.eq.s32.totalorder %s104, 0
      %s107 = sadd.s32 %s106, 1
      %s108 = scalar_select %p105, %s106, %s107
      %p111 = pneg %p105
      %p112 = scmp.eq.s32.totalorder %s12, 3
      %p113 = por %p111, %p112
      %p114 = scmp.ne.s32.totalorder %s106, %s109
      %p115 = scmp.eq.s32.totalorder %s12, 0
      %p116 = por %p114, %p115
      %p117 = scmp.ne.s32.totalorder %s106, %s109
      %p118 = scmp.eq.s32.totalorder %s17, 3
      %p119 = por %p117, %p118
      %p120 = scmp.ne.s32.totalorder %s109, %s110
      %p121 = scmp.eq.s32.totalorder %s17, 0
      %p122 = por %p120, %p121
      %p123 = scmp.ne.s32.totalorder %s109, %s110
      %p124 = scmp.eq.s32.totalorder %s18, 3
      %p125 = por %p123, %p124
      %p127 = scmp.ne.s32.totalorder %s110, %s126
      %p128 = scmp.eq.s32.totalorder %s18, 0
      %p129 = por %p127, %p128
      %p130 = scmp.le.s32.totalorder 1, %s12
      %p131 = scmp.lt.s32.totalorder %s12, 5
      %p132 = pnand %p130, %p131
      %p133 = pneg %p132
      // Predicated region
      $region9: #{visible_module_forward.1} parent=5 // pred_check
        _
      $region10: #{visible_module_forward.1} parent=5 // pred_check_branch
        %135 = sbr.rel (%p132) target = $region12
      $region11: #{visible_module_forward.1} parent=5 // pred_region
        %s136 = ssub.s32 %s12, 1
        // Predicated region
        $region13: #{visible_module_forward.1} parent=11 // pred_check
          %p137 = pneg %p73
        $region14: #{visible_module_forward.1} parent=11 // pred_check_branch
          %139 = sbr.rel (%p137) target = $region16
        $region15: #{visible_module_forward.1} parent=11 // pred_region
          _
        $region16: #{visible_module_forward.1} parent=11 // pred_fallthru
          _
        // Predicated region
        $region17: #{visible_module_forward.1} parent=11 // pred_check
          %p140 = pneg %p94
        $region18: #{visible_module_forward.1} parent=11 // pred_check_branch
          %142 = sbr.rel (%p140) target = $region20
        $region19: #{visible_module_forward.1} parent=11 // pred_region
          _
        $region20: #{visible_module_forward.1} parent=11 // pred_fallthru
          _
      $region12: #{visible_module_forward.1} parent=5 // pred_fallthru
        _
      %p143 = scmp.lt.s32.totalorder %s12, 4
      // Predicated region
      $region21: #{visible_module_forward.1} parent=5 // pred_check
        %p144 = pneg %p143
      $region22: #{visible_module_forward.1} parent=5 // pred_check_branch
        %146 = sbr.rel (%p144) target = $region24
      $region23: #{visible_module_forward.1} parent=5 // pred_region
        // Predicated region
        $region25: #{visible_module_forward.1} parent=23 // pred_check
          %p147 = pneg %p46
        $region26: #{visible_module_forward.1} parent=23 // pred_check_branch
          %149 = sbr.rel (%p147) target = $region28
        $region27: #{visible_module_forward.1} parent=23 // pred_region
          %p150 = scmp.lt.s32.totalorder %s19, 1
          %s151 = scalar_select %p150, %s19, 1
          %p152 = scmp.lt.s32.totalorder %s20, 1
          %s153 = scalar_select %p152, %s20, 1
          %s154 = smul.addr %s153, 24
          %s155 = smul.addr %s151, 48
          %s156 = sadd.s32 %s154, %s155
          %s157 = smul.addr %s156, 4
          %s158 = scalar_lea.vmem %s0, %s157
        $region28: #{visible_module_forward.1} parent=23 // pred_fallthru
          _
      $region24: #{visible_module_forward.1} parent=5 // pred_fallthru
        _
      %p159 = scmp.le.s32.totalorder 1, %s12
      %p160 = scmp.lt.s32.totalorder %s12, 5
      %p161 = pnand %p159, %p160
      %p162 = pneg %p161
      // Predicated region
      $region29: #{visible_module_forward.1} parent=5 // pred_check
        _
      $region30: #{visible_module_forward.1} parent=5 // pred_check_branch
        %164 = sbr.rel (%p161) target = $region32
      $region31: #{visible_module_forward.1} parent=5 // pred_region
        %s165 = ssub.s32 %s12, 1
        %p166 = scmp.lt.s32.totalorder %s21, 1
        %s167 = scalar_select %p166, %s21, 1
        %p168 = scmp.lt.s32.totalorder %s22, 1
        %s169 = scalar_select %p168, %s22, 1
        %s170 = smul.addr %s169, 24
        %s171 = smul.addr %s167, 48
        %s172 = sadd.s32 %s170, %s171
        %s173 = smul.addr %s172, 4
        %s174 = scalar_lea.vmem %s0, %s173
        %p175 = pneg %p52
        %p176 = pneg %p49
        %p177 = pneg %p73
        %p178 = pneg %p70
        %p179 = pneg %p94
        %p180 = pneg %p91
        %p181 = pneg %p122
        %p182 = pneg %p119
        %s183 = sand.u32 %s109, 1
        %s184 = scalar_lea.sflag [#allocation4], %s183
        %s185 = sand.u32 %s109, 1
        %s186 = smul.addr %s185, 32
        %s187 = scalar_lea.vmem [#allocation3], %s186
        %p188 = scmp.lt.s32.totalorder %s21, 1
        %s189 = scalar_select %p188, %s21, 1
        %p190 = scmp.lt.s32.totalorder %s22, 1
        %s191 = scalar_select %p190, %s22, 1
        %s192 = smul.addr %s191, 24
        %s193 = smul.addr %s189, 48
        %s194 = sadd.s32 %s192, %s193
        %s195 = smul.addr %s194, 4
        %s196 = scalar_lea.vmem %s0, %s195
        %s197 = smul.u32 4, %s22
        %v199 = vld [vmem:[%s196] sm:$0xf]
        %v200 = vld [vmem:[%s196 + $0x4] sm:$0xf]
        %v201 = vld [vmem:[%s196 + $0x8] sm:$0xf]
        %v202 = vld [vmem:[%s196 + $0xc] sm:$0xf]
        %v203 = vld [vmem:[%s196 + $0x10] sm:$0xf]
        %v204 = vld [vmem:[%s196 + $0x14] sm:$0xf]
        %v205 = vld [vmem:[%s196 + $0x18] sm:$0xf]
        %v206 = vld [vmem:[%s196 + $0x1c] sm:$0xf]
        %v207 = vld [vmem:[%s196 + $0x20] sm:$0xf]
        %v208 = vld [vmem:[%s196 + $0x24] sm:$0xf]
        %v209 = vld [vmem:[%s196 + $0x28] sm:$0xf]
        %v210 = vld [vmem:[%s196 + $0x2c] sm:$0xf]
        %v211 = vld [vmem:[%s196 + $0x30] sm:$0xf]
        %v212 = vld [vmem:[%s196 + $0x34] sm:$0xf]
        %v213 = vld [vmem:[%s196 + $0x38] sm:$0xf]
        %v214 = vld [vmem:[%s196 + $0x3c] sm:$0xf]
        %v215 = vld [vmem:[%s196 + $0x40] sm:$0xf]
        %v216 = vld [vmem:[%s196 + $0x44] sm:$0xf]
        %v217 = vld [vmem:[%s1] sm:$0xf]
        %v218 = vld [vmem:[%s1 + $0x4] sm:$0xf]
        %v219 = vld [vmem:[%s1 + $0x8] sm:$0xf]
        %v220 = vld [vmem:[%s1 + $0xc] sm:$0xf]
        %v221 = vld [vmem:[%s1 + $0x10] sm:$0xf]
        %v222 = vld [vmem:[%s1 + $0x14] sm:$0x1]
        %s223 = scalar_lea.vmem %s196, 8
        %v224 = vld [vmem:[%s223] sm:$0xf]
        %v225 = vld [vmem:[%s223 + $0x4] sm:$0xf]
        %v226 = vld [vmem:[%s223 + $0x8] sm:$0xf]
        %v227 = vld [vmem:[%s223 + $0xc] sm:$0xf]
        %v228 = vld [vmem:[%s223 + $0x10] sm:$0xf]
        %v229 = vld [vmem:[%s223 + $0x14] sm:$0xf]
        %v230 = vld [vmem:[%s223 + $0x18] sm:$0xf]
        %v231 = vld [vmem:[%s223 + $0x1c] sm:$0xf]
        %v232 = vld [vmem:[%s223 + $0x20] sm:$0xf]
        %v233 = vld [vmem:[%s223 + $0x24] sm:$0xf]
        %v234 = vld [vmem:[%s223 + $0x28] sm:$0xf]
        %v235 = vld [vmem:[%s223 + $0x2c] sm:$0xf]
        %v236 = vld [vmem:[%s223 + $0x30] sm:$0xf]
        %v237 = vld [vmem:[%s223 + $0x34] sm:$0xf]
        %v238 = vld [vmem:[%s223 + $0x38] sm:$0xf]
        %v239 = vld [vmem:[%s223 + $0x3c] sm:$0xf]
        %v240 = vld [vmem:[%s223 + $0x40] sm:$0xf]
        %v241 = vld [vmem:[%s223 + $0x44] sm:$0xf]
        %s242 = scalar_lea.vmem %s1, 24
        %v243 = vld [vmem:[%s242] sm:$0xf]
        %v244 = vld [vmem:[%s242 + $0x4] sm:$0xf]
        %v245 = vld [vmem:[%s242 + $0x8] sm:$0xf]
        %v246 = vld [vmem:[%s242 + $0xc] sm:$0xf]
        %v247 = vld [vmem:[%s242 + $0x10] sm:$0xf]
        %v248 = vld [vmem:[%s242 + $0x14] sm:$0x1]
        %v267 = vunpack.c.l.b16 %v224
        %v268 = vunpack.c.l.b16 %v225
        %v269 = vunpack.c.l.b16 %v226
        %v270 = vunpack.c.l.b16 %v227
        %v271 = vunpack.c.l.b16 %v228
        %v272 = vunpack.c.l.b16 %v229
        %v273 = vunpack.c.l.b16 %v230
        %v274 = vunpack.c.l.b16 %v231
        %v275 = vunpack.c.l.b16 %v232
        %v276 = vunpack.c.l.b16 %v233
        %v277 = vunpack.c.l.b16 %v234
        %v278 = vunpack.c.l.b16 %v235
        %v279 = vunpack.c.l.b16 %v236
        %v280 = vunpack.c.l.b16 %v237
        %v281 = vunpack.c.l.b16 %v238
        %v282 = vunpack.c.l.b16 %v239
        %v283 = vunpack.c.l.b16 %v240
        %v284 = vunpack.c.l.b16 %v241
        %v285 = vpack.c.b16 %v268, %v267
        %v286 = vpack.c.b16 %v270, %v269
        %v287 = vpack.c.b16 %v272, %v271
        %v288 = vpack.c.b16 %v274, %v273
        %v289 = vpack.c.b16 %v276, %v275
        %v290 = vpack.c.b16 %v278, %v277
        %v291 = vpack.c.b16 %v280, %v279
        %v292 = vpack.c.b16 %v282, %v281
        %v293 = vpack.c.b16 %v284, %v283
        %v300 = vunpack.c.l.b16 %v243
        %v301 = vunpack.c.l.b16 %v244
        %v302 = vunpack.c.l.b16 %v245
        %v303 = vunpack.c.l.b16 %v246
        %v304 = vunpack.c.l.b16 %v247
        %v305 = vunpack.c.l.b16 %v248
        %v306 = vpack.c.b16 %v301, %v300
        %v307 = vpack.c.b16 %v303, %v302
        %v308 = vpack.c.b16 %v305, %v304
        %vm311 = vcmask 343040
        %v313 = vsel %vm311, %v285, 0
        %v316 = vsel %vm311, %v286, 0
        %v319 = vsel %vm311, %v287, 0
        %v322 = vsel %vm311, %v288, 0
        %v325 = vsel %vm311, %v289, 0
        %v328 = vsel %vm311, %v290, 0
        %v331 = vsel %vm311, %v291, 0
        %v334 = vsel %vm311, %v292, 0
        %v337 = vsel %vm311, %v293, 0
        %vm339 = vcmask 1044480
        %v341 = vsel %vm339, %v308, 0
        %343 = vmatpush.bf16.msra.mxu0 0
        %344 = vmatpush.bf16.msra.mxu0 0
        %345 = vmatpush.bf16.msra.mxu0 0
        %346 = vmatpush.bf16.msra.mxu0 0
        %347 = vmatpush.bf16.msra.mxu0 0
        %348 = vmatpush.bf16.msra.mxu0 %v341
        %349 = vmatpush.bf16.msra.mxu0 %v307
        %350 = vmatpush.bf16.msra.mxu0 %v306
        %351 = vmatmul.bf16.gmra.mxu0 %v313
        %v352 = vpop.f32.mrf.mxu0
        %v353 = vadd.f32 0.0, %v352
        %v354 = vpop.f32.mrf.mxu0
        %v355 = vadd.f32 0.0, %v354
        %356 = vmatmul.bf16.gmra.mxu0 %v316
        %v357 = vpop.f32.mrf.mxu0
        %v358 = vadd.f32 0.0, %v357
        %v359 = vpop.f32.mrf.mxu0
        %v360 = vadd.f32 0.0, %v359
        %361 = vmatmul.bf16.gmra.mxu0 %v319
        %v362 = vpop.f32.mrf.mxu0
        %v363 = vadd.f32 0.0, %v362
        %v364 = vpop.f32.mrf.mxu0
        %v365 = vadd.f32 0.0, %v364
        %366 = vmatmul.bf16.gmra.mxu0 %v322
        %v367 = vpop.f32.mrf.mxu0
        %v368 = vadd.f32 0.0, %v367
        %v369 = vpop.f32.mrf.mxu0
        %v370 = vadd.f32 0.0, %v369
        %371 = vmatmul.bf16.gmra.mxu0 %v325
        %v372 = vpop.f32.mrf.mxu0
        %v373 = vadd.f32 0.0, %v372
        %v374 = vpop.f32.mrf.mxu0
        %v375 = vadd.f32 0.0, %v374
        %376 = vmatmul.bf16.gmra.mxu0 %v328
        %v377 = vpop.f32.mrf.mxu0
        %v378 = vadd.f32 0.0, %v377
        %v379 = vpop.f32.mrf.mxu0
        %v380 = vadd.f32 0.0, %v379
        %381 = vmatmul.bf16.gmra.mxu0 %v331
        %v382 = vpop.f32.mrf.mxu0
        %v383 = vadd.f32 0.0, %v382
        %v384 = vpop.f32.mrf.mxu0
        %v385 = vadd.f32 0.0, %v384
        %386 = vmatmul.bf16.gmra.mxu0 %v334
        %v387 = vpop.f32.mrf.mxu0
        %v388 = vadd.f32 0.0, %v387
        %v389 = vpop.f32.mrf.mxu0
        %v390 = vadd.f32 0.0, %v389
        %391 = vmatmul.bf16.gmra.mxu0 %v337
        %v392 = vpop.f32.mrf.mxu0
        %v393 = vadd.f32 0.0, %v392
        %v394 = vpop.f32.mrf.mxu0
        %v395 = vadd.f32 0.0, %v394
        %396 = vdwg.mxu0
        %v415 = vunpack.c.l.b16 %v199
        %v416 = vunpack.c.l.b16 %v200
        %v417 = vunpack.c.l.b16 %v201
        %v418 = vunpack.c.l.b16 %v202
        %v419 = vunpack.c.l.b16 %v203
        %v420 = vunpack.c.l.b16 %v204
        %v421 = vunpack.c.l.b16 %v205
        %v422 = vunpack.c.l.b16 %v206
        %v423 = vunpack.c.l.b16 %v207
        %v424 = vunpack.c.l.b16 %v208
        %v425 = vunpack.c.l.b16 %v209
        %v426 = vunpack.c.l.b16 %v210
        %v427 = vunpack.c.l.b16 %v211
        %v428 = vunpack.c.l.b16 %v212
        %v429 = vunpack.c.l.b16 %v213
        %v430 = vunpack.c.l.b16 %v214
        %v431 = vunpack.c.l.b16 %v215
        %v432 = vunpack.c.l.b16 %v216
        %v433 = vpack.c.b16 %v416, %v415
        %v434 = vpack.c.b16 %v418, %v417
        %v435 = vpack.c.b16 %v420, %v419
        %v436 = vpack.c.b16 %v422, %v421
        %v437 = vpack.c.b16 %v424, %v423
        %v438 = vpack.c.b16 %v426, %v425
        %v439 = vpack.c.b16 %v428, %v427
        %v440 = vpack.c.b16 %v430, %v429
        %v441 = vpack.c.b16 %v432, %v431
        %v448 = vunpack.c.l.b16 %v217
        %v449 = vunpack.c.l.b16 %v218
        %v450 = vunpack.c.l.b16 %v219
        %v451 = vunpack.c.l.b16 %v220
        %v452 = vunpack.c.l.b16 %v221
        %v453 = vunpack.c.l.b16 %v222
        %v454 = vpack.c.b16 %v449, %v448
        %v455 = vpack.c.b16 %v451, %v450
        %v456 = vpack.c.b16 %v453, %v452
        %v460 = vsel %vm311, %v433, 0
        %v463 = vsel %vm311, %v434, 0
        %v466 = vsel %vm311, %v435, 0
        %v469 = vsel %vm311, %v436, 0
        %v472 = vsel %vm311, %v437, 0
        %v475 = vsel %vm311, %v438, 0
        %v478 = vsel %vm311, %v439, 0
        %v481 = vsel %vm311, %v440, 0
        %v484 = vsel %vm311, %v441, 0
        %v487 = vsel %vm339, %v456, 0
        %489 = vmatpush.bf16.msra.mxu0 0
        %490 = vmatpush.bf16.msra.mxu0 0
        %491 = vmatpush.bf16.msra.mxu0 0
        %492 = vmatpush.bf16.msra.mxu0 0
        %493 = vmatpush.bf16.msra.mxu0 0
        %494 = vmatpush.bf16.msra.mxu0 %v487
        %495 = vmatpush.bf16.msra.mxu0 %v455
        %496 = vmatpush.bf16.msra.mxu0 %v454
        %497 = vmatmul.bf16.gmra.mxu0 %v460
        %v498 = vpop.f32.mrf.mxu0
        %v499 = vadd.f32 %v353, %v498
        %v500 = vpop.f32.mrf.mxu0
        %v501 = vadd.f32 %v355, %v500
        %502 = vmatmul.bf16.gmra.mxu0 %v463
        %v503 = vpop.f32.mrf.mxu0
        %v504 = vadd.f32 %v358, %v503
        %v505 = vpop.f32.mrf.mxu0
        %v506 = vadd.f32 %v360, %v505
        %507 = vmatmul.bf16.gmra.mxu0 %v466
        %v508 = vpop.f32.mrf.mxu0
        %v509 = vadd.f32 %v363, %v508
        %v510 = vpop.f32.mrf.mxu0
        %v511 = vadd.f32 %v365, %v510
        %512 = vmatmul.bf16.gmra.mxu0 %v469
        %v513 = vpop.f32.mrf.mxu0
        %v514 = vadd.f32 %v368, %v513
        %v515 = vpop.f32.mrf.mxu0
        %v516 = vadd.f32 %v370, %v515
        %517 = vmatmul.bf16.gmra.mxu0 %v472
        %v518 = vpop.f32.mrf.mxu0
        %v519 = vadd.f32 %v373, %v518
        %v520 = vpop.f32.mrf.mxu0
        %v521 = vadd.f32 %v375, %v520
        %522 = vmatmul.bf16.gmra.mxu0 %v475
        %v523 = vpop.f32.mrf.mxu0
        %v524 = vadd.f32 %v378, %v523
        %v525 = vpop.f32.mrf.mxu0
        %v526 = vadd.f32 %v380, %v525
        %527 = vmatmul.bf16.gmra.mxu0 %v478
        %v528 = vpop.f32.mrf.mxu0
        %v529 = vadd.f32 %v383, %v528
        %v530 = vpop.f32.mrf.mxu0
        %v531 = vadd.f32 %v385, %v530
        %532 = vmatmul.bf16.gmra.mxu0 %v481
        %v533 = vpop.f32.mrf.mxu0
        %v534 = vadd.f32 %v388, %v533
        %v535 = vpop.f32.mrf.mxu0
        %v536 = vadd.f32 %v390, %v535
        %537 = vmatmul.bf16.gmra.mxu0 %v484
        %v538 = vpop.f32.mrf.mxu0
        %v539 = vadd.f32 %v393, %v538
        %v540 = vpop.f32.mrf.mxu0
        %v541 = vadd.f32 %v395, %v540
        %542 = vdwg.mxu0
        %s543 = scalar_lea.vmem %s196, 16
        %v544 = vld [vmem:[%s543] sm:$0xf]
        %v545 = vld [vmem:[%s543 + $0x4] sm:$0xf]
        %v546 = vld [vmem:[%s543 + $0x8] sm:$0xf]
        %v547 = vld [vmem:[%s543 + $0xc] sm:$0xf]
        %v548 = vld [vmem:[%s543 + $0x10] sm:$0xf]
        %v549 = vld [vmem:[%s543 + $0x14] sm:$0xf]
        %v550 = vld [vmem:[%s543 + $0x18] sm:$0xf]
        %v551 = vld [vmem:[%s543 + $0x1c] sm:$0xf]
        %v552 = vld [vmem:[%s543 + $0x20] sm:$0xf]
        %v553 = vld [vmem:[%s543 + $0x24] sm:$0xf]
        %v554 = vld [vmem:[%s543 + $0x28] sm:$0xf]
        %v555 = vld [vmem:[%s543 + $0x2c] sm:$0xf]
        %v556 = vld [vmem:[%s543 + $0x30] sm:$0xf]
        %v557 = vld [vmem:[%s543 + $0x34] sm:$0xf]
        %v558 = vld [vmem:[%s543 + $0x38] sm:$0xf]
        %v559 = vld [vmem:[%s543 + $0x3c] sm:$0xf]
        %v560 = vld [vmem:[%s543 + $0x40] sm:$0xf]
        %v561 = vld [vmem:[%s543 + $0x44] sm:$0xf]
        %s562 = scalar_lea.vmem %s1, 48
        %v563 = vld [vmem:[%s562] sm:$0xf]
        %v564 = vld [vmem:[%s562 + $0x4] sm:$0xf]
        %v565 = vld [vmem:[%s562 + $0x8] sm:$0xf]
        %v566 = vld [vmem:[%s562 + $0xc] sm:$0xf]
        %v567 = vld [vmem:[%s562 + $0x10] sm:$0xf]
        %v568 = vld [vmem:[%s562 + $0x14] sm:$0x1]
        %v587 = vunpack.c.l.b16 %v544
        %v588 = vunpack.c.l.b16 %v545
        %v589 = vunpack.c.l.b16 %v546
        %v590 = vunpack.c.l.b16 %v547
        %v591 = vunpack.c.l.b16 %v548
        %v592 = vunpack.c.l.b16 %v549
        %v593 = vunpack.c.l.b16 %v550
        %v594 = vunpack.c.l.b16 %v551
        %v595 = vunpack.c.l.b16 %v552
        %v596 = vunpack.c.l.b16 %v553
        %v597 = vunpack.c.l.b16 %v554
        %v598 = vunpack.c.l.b16 %v555
        %v599 = vunpack.c.l.b16 %v556
        %v600 = vunpack.c.l.b16 %v557
        %v601 = vunpack.c.l.b16 %v558
        %v602 = vunpack.c.l.b16 %v559
        %v603 = vunpack.c.l.b16 %v560
        %v604 = vunpack.c.l.b16 %v561
        %v605 = vpack.c.b16 %v588, %v587
        %v606 = vpack.c.b16 %v590, %v589
        %v607 = vpack.c.b16 %v592, %v591
        %v608 = vpack.c.b16 %v594, %v593
        %v609 = vpack.c.b16 %v596, %v595
        %v610 = vpack.c.b16 %v598, %v597
        %v611 = vpack.c.b16 %v600, %v599
        %v612 = vpack.c.b16 %v602, %v601
        %v613 = vpack.c.b16 %v604, %v603
        %v620 = vunpack.c.l.b16 %v563
        %v621 = vunpack.c.l.b16 %v564
        %v622 = vunpack.c.l.b16 %v565
        %v623 = vunpack.c.l.b16 %v566
        %v624 = vunpack.c.l.b16 %v567
        %v625 = vunpack.c.l.b16 %v568
        %v626 = vpack.c.b16 %v621, %v620
        %v627 = vpack.c.b16 %v623, %v622
        %v628 = vpack.c.b16 %v625, %v624
        %v632 = vsel %vm311, %v605, 0
        %v635 = vsel %vm311, %v606, 0
        %v638 = vsel %vm311, %v607, 0
        %v641 = vsel %vm311, %v608, 0
        %v644 = vsel %vm311, %v609, 0
        %v647 = vsel %vm311, %v610, 0
        %v650 = vsel %vm311, %v611, 0
        %v653 = vsel %vm311, %v612, 0
        %v656 = vsel %vm311, %v613, 0
        %v659 = vsel %vm339, %v628, 0
        %661 = vmatpush.bf16.msra.mxu0 0
        %662 = vmatpush.bf16.msra.mxu0 0
        %663 = vmatpush.bf16.msra.mxu0 0
        %664 = vmatpush.bf16.msra.mxu0 0
        %665 = vmatpush.bf16.msra.mxu0 0
        %666 = vmatpush.bf16.msra.mxu0 %v659
        %667 = vmatpush.bf16.msra.mxu0 %v627
        %668 = vmatpush.bf16.msra.mxu0 %v626
        %669 = vmatmul.bf16.gmra.mxu0 %v632
        %v670 = vpop.f32.mrf.mxu0
        %v671 = vadd.f32 0.0, %v670
        %v672 = vpop.f32.mrf.mxu0
        %v673 = vadd.f32 0.0, %v672
        %674 = vmatmul.bf16.gmra.mxu0 %v635
        %v675 = vpop.f32.mrf.mxu0
        %v676 = vadd.f32 0.0, %v675
        %v677 = vpop.f32.mrf.mxu0
        %v678 = vadd.f32 0.0, %v677
        %679 = vmatmul.bf16.gmra.mxu0 %v638
        %v680 = vpop.f32.mrf.mxu0
        %v681 = vadd.f32 0.0, %v680
        %v682 = vpop.f32.mrf.mxu0
        %v683 = vadd.f32 0.0, %v682
        %684 = vmatmul.bf16.gmra.mxu0 %v641
        %v685 = vpop.f32.mrf.mxu0
        %v686 = vadd.f32 0.0, %v685
        %v687 = vpop.f32.mrf.mxu0
        %v688 = vadd.f32 0.0, %v687
        %689 = vmatmul.bf16.gmra.mxu0 %v644
        %v690 = vpop.f32.mrf.mxu0
        %v691 = vadd.f32 0.0, %v690
        %v692 = vpop.f32.mrf.mxu0
        %v693 = vadd.f32 0.0, %v692
        %694 = vmatmul.bf16.gmra.mxu0 %v647
        %v695 = vpop.f32.mrf.mxu0
        %v696 = vadd.f32 0.0, %v695
        %v697 = vpop.f32.mrf.mxu0
        %v698 = vadd.f32 0.0, %v697
        %699 = vmatmul.bf16.gmra.mxu0 %v650
        %v700 = vpop.f32.mrf.mxu0
        %v701 = vadd.f32 0.0, %v700
        %v702 = vpop.f32.mrf.mxu0
        %v703 = vadd.f32 0.0, %v702
        %704 = vmatmul.bf16.gmra.mxu0 %v653
        %v705 = vpop.f32.mrf.mxu0
        %v706 = vadd.f32 0.0, %v705
        %v707 = vpop.f32.mrf.mxu0
        %v708 = vadd.f32 0.0, %v707
        %709 = vmatmul.bf16.gmra.mxu0 %v656
        %v710 = vpop.f32.mrf.mxu0
        %v711 = vadd.f32 0.0, %v710
        %v712 = vpop.f32.mrf.mxu0
        %v713 = vadd.f32 0.0, %v712
        %714 = vdwg.mxu0
        %v715 = vadd.f32 %v499, %v671
        %v716 = vadd.f32 %v501, %v673
        %v717 = vadd.f32 %v504, %v676
        %v718 = vadd.f32 %v506, %v678
        %v719 = vadd.f32 %v509, %v681
        %v720 = vadd.f32 %v511, %v683
        %v721 = vadd.f32 %v514, %v686
        %v722 = vadd.f32 %v516, %v688
        %v723 = vadd.f32 %v519, %v691
        %v724 = vadd.f32 %v521, %v693
        %v725 = vadd.f32 %v524, %v696
        %v726 = vadd.f32 %v526, %v698
        %v727 = vadd.f32 %v529, %v701
        %v728 = vadd.f32 %v531, %v703
        %v729 = vadd.f32 %v534, %v706
        %v730 = vadd.f32 %v536, %v708
        %v731 = vadd.f32 %v539, %v711
        %v732 = vadd.f32 %v541, %v713
        %s733 = scalar_lea.vmem %s196, 24
        %v734 = vld [vmem:[%s733] sm:$0xf]
        %v735 = vld [vmem:[%s733 + $0x4] sm:$0xf]
        %v736 = vld [vmem:[%s733 + $0x8] sm:$0xf]
        %v737 = vld [vmem:[%s733 + $0xc] sm:$0xf]
        %v738 = vld [vmem:[%s733 + $0x10] sm:$0xf]
        %v739 = vld [vmem:[%s733 + $0x14] sm:$0xf]
        %v740 = vld [vmem:[%s733 + $0x18] sm:$0xf]
        %v741 = vld [vmem:[%s733 + $0x1c] sm:$0xf]
        %v742 = vld [vmem:[%s733 + $0x20] sm:$0xf]
        %v743 = vld [vmem:[%s733 + $0x24] sm:$0xf]
        %v744 = vld [vmem:[%s733 + $0x28] sm:$0xf]
        %v745 = vld [vmem:[%s733 + $0x2c] sm:$0xf]
        %v746 = vld [vmem:[%s733 + $0x30] sm:$0xf]
        %v747 = vld [vmem:[%s733 + $0x34] sm:$0xf]
        %v748 = vld [vmem:[%s733 + $0x38] sm:$0xf]
        %v749 = vld [vmem:[%s733 + $0x3c] sm:$0xf]
        %v750 = vld [vmem:[%s733 + $0x40] sm:$0xf]
        %v751 = vld [vmem:[%s733 + $0x44] sm:$0xf]
        %s752 = scalar_lea.vmem %s1, 72
        %v753 = vld [vmem:[%s752] sm:$0xf]
        %v754 = vld [vmem:[%s752 + $0x4] sm:$0xf]
        %v755 = vld [vmem:[%s752 + $0x8] sm:$0xf]
        %v756 = vld [vmem:[%s752 + $0xc] sm:$0xf]
        %v757 = vld [vmem:[%s752 + $0x10] sm:$0xf]
        %v758 = vld [vmem:[%s752 + $0x14] sm:$0x1]
        %v777 = vunpack.c.l.b16 %v734
        %v778 = vunpack.c.l.b16 %v735
        %v779 = vunpack.c.l.b16 %v736
        %v780 = vunpack.c.l.b16 %v737
        %v781 = vunpack.c.l.b16 %v738
        %v782 = vunpack.c.l.b16 %v739
        %v783 = vunpack.c.l.b16 %v740
        %v784 = vunpack.c.l.b16 %v741
        %v785 = vunpack.c.l.b16 %v742
        %v786 = vunpack.c.l.b16 %v743
        %v787 = vunpack.c.l.b16 %v744
        %v788 = vunpack.c.l.b16 %v745
        %v789 = vunpack.c.l.b16 %v746
        %v790 = vunpack.c.l.b16 %v747
        %v791 = vunpack.c.l.b16 %v748
        %v792 = vunpack.c.l.b16 %v749
        %v793 = vunpack.c.l.b16 %v750
        %v794 = vunpack.c.l.b16 %v751
        %v795 = vpack.c.b16 %v778, %v777
        %v796 = vpack.c.b16 %v780, %v779
        %v797 = vpack.c.b16 %v782, %v781
        %v798 = vpack.c.b16 %v784, %v783
        %v799 = vpack.c.b16 %v786, %v785
        %v800 = vpack.c.b16 %v788, %v787
        %v801 = vpack.c.b16 %v790, %v789
        %v802 = vpack.c.b16 %v792, %v791
        %v803 = vpack.c.b16 %v794, %v793
        %v810 = vunpack.c.l.b16 %v753
        %v811 = vunpack.c.l.b16 %v754
        %v812 = vunpack.c.l.b16 %v755
        %v813 = vunpack.c.l.b16 %v756
        %v814 = vunpack.c.l.b16 %v757
        %v815 = vunpack.c.l.b16 %v758
        %v816 = vpack.c.b16 %v811, %v810
        %v817 = vpack.c.b16 %v813, %v812
        %v818 = vpack.c.b16 %v815, %v814
        %v822 = vsel %vm311, %v795, 0
        %v825 = vsel %vm311, %v796, 0
        %v828 = vsel %vm311, %v797, 0
        %v831 = vsel %vm311, %v798, 0
        %v834 = vsel %vm311, %v799, 0
        %v837 = vsel %vm311, %v800, 0
        %v840 = vsel %vm311, %v801, 0
        %v843 = vsel %vm311, %v802, 0
        %v846 = vsel %vm311, %v803, 0
        %v849 = vsel %vm339, %v818, 0
        %851 = vmatpush.bf16.msra.mxu0 0
        %852 = vmatpush.bf16.msra.mxu0 0
        %853 = vmatpush.bf16.msra.mxu0 0
        %854 = vmatpush.bf16.msra.mxu0 0
        %855 = vmatpush.bf16.msra.mxu0 0
        %856 = vmatpush.bf16.msra.mxu0 %v849
        %857 = vmatpush.bf16.msra.mxu0 %v817
        %858 = vmatpush.bf16.msra.mxu0 %v816
        %859 = vmatmul.bf16.gmra.mxu0 %v822
        %v860 = vpop.f32.mrf.mxu0
        %v861 = vadd.f32 0.0, %v860
        %v862 = vpop.f32.mrf.mxu0
        %v863 = vadd.f32 0.0, %v862
        %864 = vmatmul.bf16.gmra.mxu0 %v825
        %v865 = vpop.f32.mrf.mxu0
        %v866 = vadd.f32 0.0, %v865
        %v867 = vpop.f32.mrf.mxu0
        %v868 = vadd.f32 0.0, %v867
        %869 = vmatmul.bf16.gmra.mxu0 %v828
        %v870 = vpop.f32.mrf.mxu0
        %v871 = vadd.f32 0.0, %v870
        %v872 = vpop.f32.mrf.mxu0
        %v873 = vadd.f32 0.0, %v872
        %874 = vmatmul.bf16.gmra.mxu0 %v831
        %v875 = vpop.f32.mrf.mxu0
        %v876 = vadd.f32 0.0, %v875
        %v877 = vpop.f32.mrf.mxu0
        %v878 = vadd.f32 0.0, %v877
        %879 = vmatmul.bf16.gmra.mxu0 %v834
        %v880 = vpop.f32.mrf.mxu0
        %v881 = vadd.f32 0.0, %v880
        %v882 = vpop.f32.mrf.mxu0
        %v883 = vadd.f32 0.0, %v882
        %884 = vmatmul.bf16.gmra.mxu0 %v837
        %v885 = vpop.f32.mrf.mxu0
        %v886 = vadd.f32 0.0, %v885
        %v887 = vpop.f32.mrf.mxu0
        %v888 = vadd.f32 0.0, %v887
        %889 = vmatmul.bf16.gmra.mxu0 %v840
        %v890 = vpop.f32.mrf.mxu0
        %v891 = vadd.f32 0.0, %v890
        %v892 = vpop.f32.mrf.mxu0
        %v893 = vadd.f32 0.0, %v892
        %894 = vmatmul.bf16.gmra.mxu0 %v843
        %v895 = vpop.f32.mrf.mxu0
        %v896 = vadd.f32 0.0, %v895
        %v897 = vpop.f32.mrf.mxu0
        %v898 = vadd.f32 0.0, %v897
        %899 = vmatmul.bf16.gmra.mxu0 %v846
        %v900 = vpop.f32.mrf.mxu0
        %v901 = vadd.f32 0.0, %v900
        %v902 = vpop.f32.mrf.mxu0
        %v903 = vadd.f32 0.0, %v902
        %904 = vdwg.mxu0
        %v905 = vadd.f32 %v715, %v861
        %v906 = vadd.f32 %v716, %v863
        %v907 = vadd.f32 %v717, %v866
        %v908 = vadd.f32 %v718, %v868
        %v909 = vadd.f32 %v719, %v871
        %v910 = vadd.f32 %v720, %v873
        %v911 = vadd.f32 %v721, %v876
        %v912 = vadd.f32 %v722, %v878
        %v913 = vadd.f32 %v723, %v881
        %v914 = vadd.f32 %v724, %v883
        %v915 = vadd.f32 %v725, %v886
        %v916 = vadd.f32 %v726, %v888
        %v917 = vadd.f32 %v727, %v891
        %v918 = vadd.f32 %v728, %v893
        %v919 = vadd.f32 %v729, %v896
        %v920 = vadd.f32 %v730, %v898
        %v921 = vadd.f32 %v731, %v901
        %v922 = vadd.f32 %v732, %v903
        %v923 = vld [vmem:[%s2] sm:$0x1]
        %v925 = vperm.slane %v923, 0
        %v927 = vadd.f32 %v905, %v925
        %v928 = vadd.f32 %v906, %v925
        %v929 = vadd.f32 %v907, %v925
        %v930 = vadd.f32 %v908, %v925
        %v931 = vadd.f32 %v909, %v925
        %v932 = vadd.f32 %v910, %v925
        %v933 = vadd.f32 %v911, %v925
        %v934 = vadd.f32 %v912, %v925
        %v935 = vadd.f32 %v913, %v925
        %v936 = vadd.f32 %v914, %v925
        %v937 = vadd.f32 %v915, %v925
        %v938 = vadd.f32 %v916, %v925
        %v939 = vadd.f32 %v917, %v925
        %v940 = vadd.f32 %v918, %v925
        %v941 = vadd.f32 %v919, %v925
        %v942 = vadd.f32 %v920, %v925
        %v943 = vadd.f32 %v921, %v925
        %v944 = vadd.f32 %v922, %v925
        %v945 = vmax.f32 %v927, 0.0
        %v946 = vmax.f32 %v928, 0.0
        %v947 = vmax.f32 %v929, 0.0
        %v948 = vmax.f32 %v930, 0.0
        %v949 = vmax.f32 %v931, 0.0
        %v950 = vmax.f32 %v932, 0.0
        %v951 = vmax.f32 %v933, 0.0
        %v952 = vmax.f32 %v934, 0.0
        %v953 = vmax.f32 %v935, 0.0
        %v954 = vmax.f32 %v936, 0.0
        %v955 = vmax.f32 %v937, 0.0
        %v956 = vmax.f32 %v938, 0.0
        %v957 = vmax.f32 %v939, 0.0
        %v958 = vmax.f32 %v940, 0.0
        %v959 = vmax.f32 %v941, 0.0
        %v960 = vmax.f32 %v942, 0.0
        %v961 = vmax.f32 %v943, 0.0
        %v962 = vmax.f32 %v944, 0.0
        %963 = vst [vmem:[#allocation2] sm:$0xff] %v945
        %964 = vst [vmem:[#allocation2 + $0x8] sm:$0xff] %v946
        %965 = vst [vmem:[#allocation2 + $0x10] sm:$0xff] %v947
        %966 = vst [vmem:[#allocation2 + $0x18] sm:$0xff] %v948
        %967 = vst [vmem:[#allocation2 + $0x20] sm:$0xff] %v949
        %968 = vst [vmem:[#allocation2 + $0x28] sm:$0xff] %v950
        %969 = vst [vmem:[#allocation2 + $0x30] sm:$0xff] %v951
        %970 = vst [vmem:[#allocation2 + $0x38] sm:$0xff] %v952
        %971 = vst [vmem:[#allocation2 + $0x40] sm:$0xff] %v953
        %972 = vst [vmem:[#allocation2 + $0x48] sm:$0xff] %v954
        %973 = vst [vmem:[#allocation2 + $0x50] sm:$0xff] %v955
        %974 = vst [vmem:[#allocation2 + $0x58] sm:$0xff] %v956
        %975 = vst [vmem:[#allocation2 + $0x60] sm:$0xff] %v957
        %976 = vst [vmem:[#allocation2 + $0x68] sm:$0xff] %v958
        %977 = vst [vmem:[#allocation2 + $0x70] sm:$0xff] %v959
        %978 = vst [vmem:[#allocation2 + $0x78] sm:$0xff] %v960
        %979 = vst [vmem:[#allocation2 + $0x80] sm:$0xff] %v961
        %980 = vst [vmem:[#allocation2 + $0x88] sm:$0xff] %v962
        %p981 = scmp.eq.s32.totalorder %s22, 0
        // Predicated region
        $region33: #{visible_module_forward.1} parent=31 // pred_check
          %p982 = pneg %p981
        $region34: #{visible_module_forward.1} parent=31 // pred_check_branch
          %984 = sbr.rel (%p982) target = $region36
        $region35: #{visible_module_forward.1} parent=31 // pred_region
          %985 = vst [vmem:[#allocation2] sm:$0xff] 0.0
          %986 = vst [vmem:[#allocation2 + $0x8] sm:$0xff] 0.0
        $region36: #{visible_module_forward.1} parent=31 // pred_fallthru
          _
        %v987 = vld [vmem:[#allocation2] sm:$0xff]
        %v988 = vld [vmem:[#allocation2 + $0x8] sm:$0xff]
        %s989 = scalar_lea.vmem [#allocation2], 16
        %v990 = vld [vmem:[%s989] sm:$0xff]
        %v991 = vld [vmem:[%s989 + $0x8] sm:$0xff]
        %s992 = scalar_lea.vmem [#allocation2], 32
        %v993 = vld [vmem:[%s992] sm:$0xff]
        %v994 = vld [vmem:[%s992 + $0x8] sm:$0xff]
        %v995 = vmax.f32 %v990, %v993
        %v996 = vmax.f32 %v991, %v994
        %v997 = vmax.f32 %v987, %v995
        %v998 = vmax.f32 %v988, %v996
        %v1001 = vrot.slane %v997, 2
        %v1002 = vrot.slane %v997, 4
        %v1003 = vrot.slane %v997, 6
        %v1004 = vrot.slane %v998, 2
        %v1005 = vrot.slane %v998, 4
        %v1006 = vrot.slane %v998, 6
        %v1013 = vperm.slane %v997, 1
        %v1014 = vperm.slane %v1001, 1
        %v1015 = vperm.slane %v1002, 1
        %v1016 = vperm.slane %v1003, 1
        %v1017 = vperm.slane %v998, 1
        %v1018 = vperm.slane %v1004, 1
        %v1019 = vperm.slane %v1005, 1
        %vm1020 = vcmask 1042434
        %v1021 = vsel %vm1020, %v1014, %v1013
        %vm1022 = vcmask 1043459
        %v1023 = vsel %vm1022, %v1015, %v1021
        %vm1024 = vcmask 1044484
        %v1025 = vsel %vm1024, %v1016, %v1023
        %vm1026 = vcmask 1045509
        %v1027 = vsel %vm1026, %v1017, %v1025
        %vm1028 = vcmask 1046534
        %v1029 = vsel %vm1028, %v1018, %v1027
        %vm1030 = vcmask 1047559
        %v1031 = vsel %vm1030, %v1019, %v1029
        %vm1033 = vcmask 1040384
        %v1034 = vsel %vm1033, 0.0, %v1031
        %v1035 = vrot.slane %v997, 7
        %v1036 = vrot.slane %v1035, 2
        %v1037 = vrot.slane %v1001, 7
        %v1038 = vrot.slane %v1037, 2
        %v1039 = vrot.slane %v1002, 7
        %v1040 = vrot.slane %v1039, 2
        %v1041 = vrot.slane %v1003, 7
        %v1042 = vrot.slane %v1041, 2
        %v1043 = vrot.slane %v998, 7
        %v1044 = vrot.slane %v1043, 2
        %v1045 = vrot.slane %v1004, 7
        %v1046 = vrot.slane %v1045, 2
        %v1047 = vrot.slane %v1005, 7
        %v1048 = vrot.slane %v1047, 2
        %v1049 = vrot.slane %v1006, 7
        %v1050 = vrot.slane %v1049, 2
        %v1059 = vmax.f32 %v997, %v1036
        %v1060 = vmax.f32 %v1001, %v1038
        %v1061 = vmax.f32 %v1002, %v1040
        %v1062 = vmax.f32 %v1003, %v1042
        %v1063 = vmax.f32 %v998, %v1044
        %v1064 = vmax.f32 %v1004, %v1046
        %v1065 = vmax.f32 %v1005, %v1048
        %v1066 = vmax.f32 %v1006, %v1050
        %v1068 = vrot.slane %v1034, 2
        %v1069 = vrot.slane %v1034, 4
        %v1070 = vrot.slane %v1034, 6
        %v1071 = vrot.slane %v1034, 1
        %v1072 = vrot.slane %v1068, 1
        %v1073 = vrot.slane %v1069, 1
        %v1074 = vrot.slane %v1070, 1
        %v1083 = vmax.f32 %v1059, %v1034
        %v1084 = vmax.f32 %v1060, %v1071
        %v1085 = vmax.f32 %v1061, %v1068
        %v1086 = vmax.f32 %v1062, %v1072
        %v1087 = vmax.f32 %v1063, %v1069
        %v1088 = vmax.f32 %v1064, %v1073
        %v1089 = vmax.f32 %v1065, %v1070
        %v1090 = vmax.f32 %v1066, %v1074
        %v1099 = vperm.slane %v1083, 0
        %v1100 = vperm.slane %v1084, 0
        %v1101 = vperm.slane %v1085, 0
        %v1102 = vperm.slane %v1086, 0
        %v1103 = vperm.slane %v1087, 0
        %v1104 = vperm.slane %v1088, 0
        %v1105 = vperm.slane %v1089, 0
        %v1106 = vperm.slane %v1090, 0
        %vm1107 = vcmask 1041409
        %v1108 = vsel %vm1107, %v1100, %v1099
        %v1109 = vsel %vm1020, %v1101, %v1108
        %v1110 = vsel %vm1022, %v1102, %v1109
        %v1111 = vsel %vm1024, %v1103, %v1110
        %v1112 = vsel %vm1026, %v1104, %v1111
        %v1113 = vsel %vm1028, %v1105, %v1112
        %v1114 = vsel %vm1030, %v1106, %v1113
        %vm1116 = vcmask 523264
        %1117 = vst.msk [vmem:[%s187] sm:$0xff] %vm1116, %v1114
        %v1118 = vld [vmem:[%s992] sm:$0xff]
        %v1119 = vld [vmem:[%s992 + $0x8] sm:$0xff]
        %s1120 = scalar_lea.vmem [#allocation2], 48
        %v1121 = vld [vmem:[%s1120] sm:$0xff]
        %v1122 = vld [vmem:[%s1120 + $0x8] sm:$0xff]
        %s1123 = scalar_lea.vmem [#allocation2], 64
        %v1124 = vld [vmem:[%s1123] sm:$0xff]
        %v1125 = vld [vmem:[%s1123 + $0x8] sm:$0xff]
        %v1126 = vmax.f32 %v1121, %v1124
        %v1127 = vmax.f32 %v1122, %v1125
        %v1128 = vmax.f32 %v1118, %v1126
        %v1129 = vmax.f32 %v1119, %v1127
        %v1132 = vrot.slane %v1128, 2
        %v1133 = vrot.slane %v1128, 4
        %v1134 = vrot.slane %v1128, 6
        %v1135 = vrot.slane %v1129, 2
        %v1136 = vrot.slane %v1129, 4
        %v1137 = vrot.slane %v1129, 6
        %v1144 = vperm.slane %v1128, 1
        %v1145 = vperm.slane %v1132, 1
        %v1146 = vperm.slane %v1133, 1
        %v1147 = vperm.slane %v1134, 1
        %v1148 = vperm.slane %v1129, 1
        %v1149 = vperm.slane %v1135, 1
        %v1150 = vperm.slane %v1136, 1
        %v1151 = vsel %vm1020, %v1145, %v1144
        %v1152 = vsel %vm1022, %v1146, %v1151
        %v1153 = vsel %vm1024, %v1147, %v1152
        %v1154 = vsel %vm1026, %v1148, %v1153
        %v1155 = vsel %vm1028, %v1149, %v1154
        %v1156 = vsel %vm1030, %v1150, %v1155
        %v1158 = vsel %vm1033, 0.0, %v1156
        %v1159 = vrot.slane %v1128, 7
        %v1160 = vrot.slane %v1159, 2
        %v1161 = vrot.slane %v1132, 7
        %v1162 = vrot.slane %v1161, 2
        %v1163 = vrot.slane %v1133, 7
        %v1164 = vrot.slane %v1163, 2
        %v1165 = vrot.slane %v1134, 7
        %v1166 = vrot.slane %v1165, 2
        %v1167 = vrot.slane %v1129, 7
        %v1168 = vrot.slane %v1167, 2
        %v1169 = vrot.slane %v1135, 7
        %v1170 = vrot.slane %v1169, 2
        %v1171 = vrot.slane %v1136, 7
        %v1172 = vrot.slane %v1171, 2
        %v1173 = vrot.slane %v1137, 7
        %v1174 = vrot.slane %v1173, 2
        %v1183 = vmax.f32 %v1128, %v1160
        %v1184 = vmax.f32 %v1132, %v1162
        %v1185 = vmax.f32 %v1133, %v1164
        %v1186 = vmax.f32 %v1134, %v1166
        %v1187 = vmax.f32 %v1129, %v1168
        %v1188 = vmax.f32 %v1135, %v1170
        %v1189 = vmax.f32 %v1136, %v1172
        %v1190 = vmax.f32 %v1137, %v1174
        %v1192 = vrot.slane %v1158, 2
        %v1193 = vrot.slane %v1158, 4
        %v1194 = vrot.slane %v1158, 6
        %v1195 = vrot.slane %v1158, 1
        %v1196 = vrot.slane %v1192, 1
        %v1197 = vrot.slane %v1193, 1
        %v1198 = vrot.slane %v1194, 1
        %v1207 = vmax.f32 %v1183, %v1158
        %v1208 = vmax.f32 %v1184, %v1195
        %v1209 = vmax.f32 %v1185, %v1192
        %v1210 = vmax.f32 %v1186, %v1196
        %v1211 = vmax.f32 %v1187, %v1193
        %v1212 = vmax.f32 %v1188, %v1197
        %v1213 = vmax.f32 %v1189, %v1194
        %v1214 = vmax.f32 %v1190, %v1198
        %v1223 = vperm.slane %v1207, 0
        %v1224 = vperm.slane %v1208, 0
        %v1225 = vperm.slane %v1209, 0
        %v1226 = vperm.slane %v1210, 0
        %v1227 = vperm.slane %v1211, 0
        %v1228 = vperm.slane %v1212, 0
        %v1229 = vperm.slane %v1213, 0
        %v1230 = vperm.slane %v1214, 0
        %v1231 = vsel %vm1107, %v1224, %v1223
        %v1232 = vsel %vm1020, %v1225, %v1231
        %v1233 = vsel %vm1022, %v1226, %v1232
        %v1234 = vsel %vm1024, %v1227, %v1233
        %v1235 = vsel %vm1026, %v1228, %v1234
        %v1236 = vsel %vm1028, %v1229, %v1235
        %v1237 = vsel %vm1030, %v1230, %v1236
        %s1239 = scalar_lea.vmem %s187, 8 [#allocation3]
        %1240 = vst.msk [vmem:[%s1239] sm:$0xff] %vm1116, %v1237
        %v1241 = vld [vmem:[%s1123] sm:$0xff]
        %v1242 = vld [vmem:[%s1123 + $0x8] sm:$0xff]
        %s1243 = scalar_lea.vmem [#allocation2], 80
        %v1244 = vld [vmem:[%s1243] sm:$0xff]
        %v1245 = vld [vmem:[%s1243 + $0x8] sm:$0xff]
        %s1246 = scalar_lea.vmem [#allocation2], 96
        %v1247 = vld [vmem:[%s1246] sm:$0xff]
        %v1248 = vld [vmem:[%s1246 + $0x8] sm:$0xff]
        %v1249 = vmax.f32 %v1244, %v1247
        %v1250 = vmax.f32 %v1245, %v1248
        %v1251 = vmax.f32 %v1241, %v1249
        %v1252 = vmax.f32 %v1242, %v1250
        %v1255 = vrot.slane %v1251, 2
        %v1256 = vrot.slane %v1251, 4
        %v1257 = vrot.slane %v1251, 6
        %v1258 = vrot.slane %v1252, 2
        %v1259 = vrot.slane %v1252, 4
        %v1260 = vrot.slane %v1252, 6
        %v1267 = vperm.slane %v1251, 1
        %v1268 = vperm.slane %v1255, 1
        %v1269 = vperm.slane %v1256, 1
        %v1270 = vperm.slane %v1257, 1
        %v1271 = vperm.slane %v1252, 1
        %v1272 = vperm.slane %v1258, 1
        %v1273 = vperm.slane %v1259, 1
        %v1274 = vsel %vm1020, %v1268, %v1267
        %v1275 = vsel %vm1022, %v1269, %v1274
        %v1276 = vsel %vm1024, %v1270, %v1275
        %v1277 = vsel %vm1026, %v1271, %v1276
        %v1278 = vsel %vm1028, %v1272, %v1277
        %v1279 = vsel %vm1030, %v1273, %v1278
        %v1281 = vsel %vm1033, 0.0, %v1279
        %v1282 = vrot.slane %v1251, 7
        %v1283 = vrot.slane %v1282, 2
        %v1284 = vrot.slane %v1255, 7
        %v1285 = vrot.slane %v1284, 2
        %v1286 = vrot.slane %v1256, 7
        %v1287 = vrot.slane %v1286, 2
        %v1288 = vrot.slane %v1257, 7
        %v1289 = vrot.slane %v1288, 2
        %v1290 = vrot.slane %v1252, 7
        %v1291 = vrot.slane %v1290, 2
        %v1292 = vrot.slane %v1258, 7
        %v1293 = vrot.slane %v1292, 2
        %v1294 = vrot.slane %v1259, 7
        %v1295 = vrot.slane %v1294, 2
        %v1296 = vrot.slane %v1260, 7
        %v1297 = vrot.slane %v1296, 2
        %v1306 = vmax.f32 %v1251, %v1283
        %v1307 = vmax.f32 %v1255, %v1285
        %v1308 = vmax.f32 %v1256, %v1287
        %v1309 = vmax.f32 %v1257, %v1289
        %v1310 = vmax.f32 %v1252, %v1291
        %v1311 = vmax.f32 %v1258, %v1293
        %v1312 = vmax.f32 %v1259, %v1295
        %v1313 = vmax.f32 %v1260, %v1297
        %v1315 = vrot.slane %v1281, 2
        %v1316 = vrot.slane %v1281, 4
        %v1317 = vrot.slane %v1281, 6
        %v1318 = vrot.slane %v1281, 1
        %v1319 = vrot.slane %v1315, 1
        %v1320 = vrot.slane %v1316, 1
        %v1321 = vrot.slane %v1317, 1
        %v1330 = vmax.f32 %v1306, %v1281
        %v1331 = vmax.f32 %v1307, %v1318
        %v1332 = vmax.f32 %v1308, %v1315
        %v1333 = vmax.f32 %v1309, %v1319
        %v1334 = vmax.f32 %v1310, %v1316
        %v1335 = vmax.f32 %v1311, %v1320
        %v1336 = vmax.f32 %v1312, %v1317
        %v1337 = vmax.f32 %v1313, %v1321
        %v1346 = vperm.slane %v1330, 0
        %v1347 = vperm.slane %v1331, 0
        %v1348 = vperm.slane %v1332, 0
        %v1349 = vperm.slane %v1333, 0
        %v1350 = vperm.slane %v1334, 0
        %v1351 = vperm.slane %v1335, 0
        %v1352 = vperm.slane %v1336, 0
        %v1353 = vperm.slane %v1337, 0
        %v1354 = vsel %vm1107, %v1347, %v1346
        %v1355 = vsel %vm1020, %v1348, %v1354
        %v1356 = vsel %vm1022, %v1349, %v1355
        %v1357 = vsel %vm1024, %v1350, %v1356
        %v1358 = vsel %vm1026, %v1351, %v1357
        %v1359 = vsel %vm1028, %v1352, %v1358
        %v1360 = vsel %vm1030, %v1353, %v1359
        %s1362 = scalar_lea.vmem %s187, 16 [#allocation3]
        %1363 = vst.msk [vmem:[%s1362] sm:$0xff] %vm1116, %v1360
        %v1364 = vld [vmem:[%s1246] sm:$0xff]
        %v1365 = vld [vmem:[%s1246 + $0x8] sm:$0xff]
        %s1366 = scalar_lea.vmem [#allocation2], 112
        %v1367 = vld [vmem:[%s1366] sm:$0xff]
        %v1368 = vld [vmem:[%s1366 + $0x8] sm:$0xff]
        %s1369 = scalar_lea.vmem [#allocation2], 128
        %v1370 = vld [vmem:[%s1369] sm:$0xff]
        %v1371 = vld [vmem:[%s1369 + $0x8] sm:$0xff]
        %v1372 = vmax.f32 %v1367, %v1370
        %v1373 = vmax.f32 %v1368, %v1371
        %v1374 = vmax.f32 %v1364, %v1372
        %v1375 = vmax.f32 %v1365, %v1373
        %v1378 = vrot.slane %v1374, 2
        %v1379 = vrot.slane %v1374, 4
        %v1380 = vrot.slane %v1374, 6
        %v1381 = vrot.slane %v1375, 2
        %v1382 = vrot.slane %v1375, 4
        %v1383 = vrot.slane %v1375, 6
        %v1390 = vperm.slane %v1374, 1
        %v1391 = vperm.slane %v1378, 1
        %v1392 = vperm.slane %v1379, 1
        %v1393 = vperm.slane %v1380, 1
        %v1394 = vperm.slane %v1375, 1
        %v1395 = vperm.slane %v1381, 1
        %v1396 = vperm.slane %v1382, 1
        %v1397 = vsel %vm1020, %v1391, %v1390
        %v1398 = vsel %vm1022, %v1392, %v1397
        %v1399 = vsel %vm1024, %v1393, %v1398
        %v1400 = vsel %vm1026, %v1394, %v1399
        %v1401 = vsel %vm1028, %v1395, %v1400
        %v1402 = vsel %vm1030, %v1396, %v1401
        %v1404 = vsel %vm1033, 0.0, %v1402
        %v1405 = vrot.slane %v1374, 7
        %v1406 = vrot.slane %v1405, 2
        %v1407 = vrot.slane %v1378, 7
        %v1408 = vrot.slane %v1407, 2
        %v1409 = vrot.slane %v1379, 7
        %v1410 = vrot.slane %v1409, 2
        %v1411 = vrot.slane %v1380, 7
        %v1412 = vrot.slane %v1411, 2
        %v1413 = vrot.slane %v1375, 7
        %v1414 = vrot.slane %v1413, 2
        %v1415 = vrot.slane %v1381, 7
        %v1416 = vrot.slane %v1415, 2
        %v1417 = vrot.slane %v1382, 7
        %v1418 = vrot.slane %v1417, 2
        %v1419 = vrot.slane %v1383, 7
        %v1420 = vrot.slane %v1419, 2
        %v1429 = vmax.f32 %v1374, %v1406
        %v1430 = vmax.f32 %v1378, %v1408
        %v1431 = vmax.f32 %v1379, %v1410
        %v1432 = vmax.f32 %v1380, %v1412
        %v1433 = vmax.f32 %v1375, %v1414
        %v1434 = vmax.f32 %v1381, %v1416
        %v1435 = vmax.f32 %v1382, %v1418
        %v1436 = vmax.f32 %v1383, %v1420
        %v1438 = vrot.slane %v1404, 2
        %v1439 = vrot.slane %v1404, 4
        %v1440 = vrot.slane %v1404, 6
        %v1441 = vrot.slane %v1404, 1
        %v1442 = vrot.slane %v1438, 1
        %v1443 = vrot.slane %v1439, 1
        %v1444 = vrot.slane %v1440, 1
        %v1453 = vmax.f32 %v1429, %v1404
        %v1454 = vmax.f32 %v1430, %v1441
        %v1455 = vmax.f32 %v1431, %v1438
        %v1456 = vmax.f32 %v1432, %v1442
        %v1457 = vmax.f32 %v1433, %v1439
        %v1458 = vmax.f32 %v1434, %v1443
        %v1459 = vmax.f32 %v1435, %v1440
        %v1460 = vmax.f32 %v1436, %v1444
        %v1469 = vperm.slane %v1453, 0
        %v1470 = vperm.slane %v1454, 0
        %v1471 = vperm.slane %v1455, 0
        %v1472 = vperm.slane %v1456, 0
        %v1473 = vperm.slane %v1457, 0
        %v1474 = vperm.slane %v1458, 0
        %v1475 = vperm.slane %v1459, 0
        %v1476 = vperm.slane %v1460, 0
        %v1477 = vsel %vm1107, %v1470, %v1469
        %v1478 = vsel %vm1020, %v1471, %v1477
        %v1479 = vsel %vm1022, %v1472, %v1478
        %v1480 = vsel %vm1024, %v1473, %v1479
        %v1481 = vsel %vm1026, %v1474, %v1480
        %v1482 = vsel %vm1028, %v1475, %v1481
        %v1483 = vsel %vm1030, %v1476, %v1482
        %s1485 = scalar_lea.vmem %s187, 24 [#allocation3]
        %1486 = vst.msk [vmem:[%s1485] sm:$0xff] %vm1116, %v1483
        %s1487 = sand.u32 %s109, 1
        %s1488 = scalar_lea.sflag [#allocation4], %s1487
        %s1489 = sand.u32 %s109, 1
        %s1490 = smul.addr %s1489, 32
        %s1491 = scalar_lea.vmem [#allocation3], %s1490
        // Predicated region
        $region37: #{visible_module_forward.1} parent=31 // pred_check
          %p1492 = pneg %p119
        $region38: #{visible_module_forward.1} parent=31 // pred_check_branch
          %1494 = sbr.rel (%p1492) target = $region40
        $region39: #{visible_module_forward.1} parent=31 // pred_region
          %s1495 = smul.u32 4, %s22
          %1497 = vsyncadd %s1488, 0
          %s1498 = smul.addr %s21, 8
          %s1499 = sadd.s32 %s1495, %s1498
          %s1500 = smul.addr %s1499, 8
          %s1501 = scalar_lea.hbm %s3, %s1500
          %s1502 = sshll.u32 %s1491, 4
          %s1503 = int_to_ptr.vmem [resolvable:$true] %s1502
          %s1504 = sshll.u32 %s1501, 4
          %s1505 = int_to_ptr.hbm [resolvable:$true] %s1504
          %1510 = dma.vmem_to_hbm [thread:$0]  %s1503, 512, %s1505, %s1488, 128, 128, 8
        $region40: #{visible_module_forward.1} parent=31 // pred_fallthru
          _
      $region32: #{visible_module_forward.1} parent=5 // pred_fallthru
        _
      %p1511 = scmp.le.s32.totalorder 2, %s12
      // Predicated region
      $region41: #{visible_module_forward.1} parent=5 // pred_check
        %p1512 = pneg %p1511
      $region42: #{visible_module_forward.1} parent=5 // pred_check_branch
        %1514 = sbr.rel (%p1512) target = $region44
      $region43: #{visible_module_forward.1} parent=5 // pred_region
        %s1515 = ssub.s32 %s12, 2
        // Predicated region
        $region45: #{visible_module_forward.1} parent=43 // pred_check
          %p1516 = pneg %p125
        $region46: #{visible_module_forward.1} parent=43 // pred_check_branch
          %1518 = sbr.rel (%p1516) target = $region48
        $region47: #{visible_module_forward.1} parent=43 // pred_region
          %s1519 = sand.u32 %s110, 1
          %s1520 = scalar_lea.sflag [#allocation4], %s1519
          %s1521 = sand.u32 %s110, 1
          %s1522 = smul.addr %s1521, 32
          %s1523 = scalar_lea.vmem [#allocation3], %s1522
          %1525 = dma.done %s1520, 512
        $region48: #{visible_module_forward.1} parent=43 // pred_fallthru
          _
      $region44: #{visible_module_forward.1} parent=5 // pred_fallthru
        _
    $region6: #{visible_module_forward.1} parent=1 // loop_footer
      %s16 = sadd.s32 1, %s12
    $region7: #{visible_module_forward.1} parent=1 // loop_footer_branch
      %11 = sbr.rel target = $region3
    $region8: #{visible_module_forward.1} parent=1 // loop_exit
      _
    %1526 = vsyncpa [#allocation4], 1
    %s1527 = scalar_lea.sflag [#allocation4], 1
    %1528 = vsyncpa %s1527, 1

</llo_original>
